<compile_context>
chip_gen: v7x
topology: tpu7x:2x2x1
jax: 0.10.0
libtpu: 0.0.40
codegen_flags: <defaults>
</compile_context>

<pallas_src>
import jax
import jax.numpy as jnp
from jax.experimental import pallas as pl
from jax.experimental.pallas import tpu as pltpu

H_PAD = 128    # hidden channels padded to one full lane tile
OUT_PAD = 128  # post_mp output lane-padded in-kernel, sliced back outside


def _full_spec(shape):
    # Whole-array block resident in VMEM (only used for the tiny tail kernel).
    return pl.BlockSpec(shape, lambda: (0,) * len(shape))


def _prelu(y, a):
    return jnp.where(y > 0.0, y, a * y)


# ---------------------------------------------------------------------------
# Kernel 1: fused pre_mp + SAGEConv1 + PReLU
#   grid = (dst node tiles, src node tiles); reduction over src tiles.
#   Output h1 is stored in bf16 (halves HBM traffic; consumed as bf16 below).
# ---------------------------------------------------------------------------
def _pre_sage_kernel(adj_ref, xs_ref, xd_ref,
                     pre_w_ref, pre_b_ref, pre_a_ref,
                     wl_ref, bl_ref, wr_ref, a_ref,
                     o_ref, acc_ref):
    j = pl.program_id(1)

    @pl.when(j == 0)
    def _():
        acc_ref[...] = jnp.zeros_like(acc_ref)

    # pre_mp on the source tile (cheap [tk, Cin] @ [Cin, H] — recomputed per
    # tile so the pre_mp activation never round-trips HBM).
    h_src = jnp.dot(xs_ref[...], pre_w_ref[...], preferred_element_type=jnp.float32)
    h_src = _prelu(h_src + pre_b_ref[...], pre_a_ref[...])

    # Sum aggregation: native bf16 x bf16 MXU dot, f32 accumulation in scratch.
    acc_ref[...] += jnp.dot(adj_ref[...], h_src.astype(jnp.bfloat16),
                            preferred_element_type=jnp.float32)

    @pl.when(j == pl.num_programs(1) - 1)
    def _():
        # Self term + output projection + PReLU, once per dst tile.
        h_dst = jnp.dot(xd_ref[...], pre_w_ref[...],
                        preferred_element_type=jnp.float32)
        h_dst = _prelu(h_dst + pre_b_ref[...], pre_a_ref[...])
        y = jnp.dot(acc_ref[...], wl_ref[...], preferred_element_type=jnp.float32)
        y = y + bl_ref[...]
        y = y + jnp.dot(h_dst, wr_ref[...], preferred_element_type=jnp.float32)
        o_ref[...] = _prelu(y, a_ref[...]).astype(o_ref.dtype)


def pre_sage_layer(adj_bf16, x_pad, pre_w, pre_b, pre_a, wl, bl, wr, a, *, tm, tk):
    n_pad, cin = x_pad.shape
    h = wl.shape[1]
    grid = (n_pad // tm, n_pad // tk)
    return pl.pallas_call(
        _pre_sage_kernel,
        out_shape=jax.ShapeDtypeStruct((n_pad, h), jnp.bfloat16),
        grid_spec=pltpu.PrefetchScalarGridSpec(
            num_scalar_prefetch=0,
            grid=grid,
            in_specs=[
                pl.BlockSpec((tm, tk), lambda i, j: (i, j)),   # adjacency tile
                pl.BlockSpec((tk, cin), lambda i, j: (j, 0)),  # x (source rows)
                pl.BlockSpec((tm, cin), lambda i, j: (i, 0)),  # x (dest rows)
                pl.BlockSpec(pre_w.shape, lambda i, j: (0, 0)),
                pl.BlockSpec(pre_b.shape, lambda i, j: (0, 0)),
                pl.BlockSpec(pre_a.shape, lambda i, j: (0, 0)),
                pl.BlockSpec(wl.shape, lambda i, j: (0, 0)),
                pl.BlockSpec(bl.shape, lambda i, j: (0, 0)),
                pl.BlockSpec(wr.shape, lambda i, j: (0, 0)),
                pl.BlockSpec(a.shape, lambda i, j: (0, 0)),
            ],
            out_specs=pl.BlockSpec((tm, h), lambda i, j: (i, 0)),
            scratch_shapes=[pltpu.VMEM((tm, h), jnp.float32)],
        ),
        compiler_params=pltpu.CompilerParams(
            dimension_semantics=("parallel", "arbitrary")),
    )(adj_bf16, x_pad, x_pad, pre_w, pre_b, pre_a, wl, bl, wr, a)


# ---------------------------------------------------------------------------
# Kernel 2: fused SAGEConv2 + PReLU + global_mean_pool
#   grid = (dst node tiles, src node tiles); reduction over src tiles.
#   Emits a per-dst-tile pooled partial (n_dst_tiles, B, H) so the dst axis can
#   be "parallel" (v7x megacore); the tiny partial sum happens in plain JAX.
#   The second conv's node activations never touch HBM.
# ---------------------------------------------------------------------------
def _sage_pool_kernel(adj_ref, hs_ref, hd_ref, pool_ref,
                      wl_ref, bl_ref, wr_ref, a_ref,
                      g_ref, acc_ref):
    j = pl.program_id(1)

    @pl.when(j == 0)
    def _():
        acc_ref[...] = jnp.zeros_like(acc_ref)

    # Native bf16 x bf16 aggregation dot, f32 accumulation.
    acc_ref[...] += jnp.dot(adj_ref[...], hs_ref[...],
                            preferred_element_type=jnp.float32)

    @pl.when(j == pl.num_programs(1) - 1)
    def _():
        y = jnp.dot(acc_ref[...], wl_ref[...], preferred_element_type=jnp.float32)
        y = y + bl_ref[...]
        y = y + jnp.dot(hd_ref[...].astype(jnp.float32), wr_ref[...],
                        preferred_element_type=jnp.float32)
        h2 = _prelu(y, a_ref[...])
        # mean-pool contribution of this dst tile (pool is row-normalized).
        g_ref[0, :, :] = jnp.dot(pool_ref[...], h2,
                                 preferred_element_type=jnp.float32)


def sage_pool_layer(adj_bf16, h1, pool, wl, bl, wr, a, *, tm, tk):
    n_pad, hdim = h1.shape
    b = pool.shape[0]
    n_dst_tiles = n_pad // tm
    grid = (n_dst_tiles, n_pad // tk)
    return pl.pallas_call(
        _sage_pool_kernel,
        out_shape=jax.ShapeDtypeStruct((n_dst_tiles, b, hdim), jnp.float32),
        grid_spec=pltpu.PrefetchScalarGridSpec(
            num_scalar_prefetch=0,
            grid=grid,
            in_specs=[
                pl.BlockSpec((tm, tk), lambda i, j: (i, j)),    # adjacency tile
                pl.BlockSpec((tk, hdim), lambda i, j: (j, 0)),  # h1 (source rows, bf16)
                pl.BlockSpec((tm, hdim), lambda i, j: (i, 0)),  # h1 (dest rows, bf16)
                pl.BlockSpec((b, tm), lambda i, j: (0, i)),     # pooling columns
                pl.BlockSpec(wl.shape, lambda i, j: (0, 0)),
                pl.BlockSpec(bl.shape, lambda i, j: (0, 0)),
                pl.BlockSpec(wr.shape, lambda i, j: (0, 0)),
                pl.BlockSpec(a.shape, lambda i, j: (0, 0)),
            ],
            out_specs=pl.BlockSpec((1, b, hdim), lambda i, j: (i, 0, 0)),
            scratch_shapes=[pltpu.VMEM((tm, hdim), jnp.float32)],
        ),
        compiler_params=pltpu.CompilerParams(
            dimension_semantics=("parallel", "arbitrary")),
    )(adj_bf16, h1, h1, pool, wl, bl, wr, a)


# ---------------------------------------------------------------------------
# Kernel 3: fused tail — fingerprint Linear+PReLU, concat (via split weights),
# post_mp Linear.  All operands are tiny; one launch, one lane-dense store.
# ---------------------------------------------------------------------------
def _tail_kernel(g_ref, fp_ref, fp_w_ref, fp_b_ref, fp_a_ref,
                 wg_ref, wfp_ref, b_ref, o_ref):
    fp_emb = jnp.dot(fp_ref[...], fp_w_ref[...], preferred_element_type=jnp.float32)
    fp_emb = _prelu(fp_emb + fp_b_ref[...], fp_a_ref[...])
    out = jnp.dot(g_ref[...], wg_ref[...], preferred_element_type=jnp.float32)
    out = out + jnp.dot(fp_emb, wfp_ref[...], preferred_element_type=jnp.float32)
    o_ref[...] = out + b_ref[...]


def tail_layer(g, fp, fp_w, fp_b, fp_a, wg, wfp, post_b):
    b = g.shape[0]
    out_pad = wg.shape[1]
    args = (g, fp, fp_w, fp_b, fp_a, wg, wfp, post_b)
    return pl.pallas_call(
        _tail_kernel,
        out_shape=jax.ShapeDtypeStruct((b, out_pad), jnp.float32),
        in_specs=[_full_spec(a.shape) for a in args],
        out_specs=_full_spec((b, out_pad)),
    )(*args)


# ---------------------------------------------------------------------------
# Parameters (deterministic synthetic init, PyTorch-Linear-style uniform),
# stored pre-padded to lane-dense shapes.  Padded columns/rows are exact zeros
# so the padded path reproduces the unpadded math.
# ---------------------------------------------------------------------------
def init_params(key, in_channels, hidden, out_channels):
    ks = jax.random.split(key, 7)

    def lin(k, fi, fo):
        kw, kb = jax.random.split(k)
        lim = 1.0 / float(fi) ** 0.5
        w = jax.random.uniform(kw, (fi, fo), jnp.float32, -lim, lim)
        b = jax.random.uniform(kb, (1, fo), jnp.float32, -lim, lim)
        return w, b

    def padw(w, rows, cols):
        return jnp.pad(w, ((0, rows - w.shape[0]), (0, cols - w.shape[1])))

    p = {}
    pre_w, pre_b = lin(ks[0], in_channels, hidden)
    p["pre_w"] = padw(pre_w, in_channels, H_PAD)
    p["pre_b"] = padw(pre_b, 1, H_PAD)
    p["pre_a"] = padw(jnp.full((1, hidden), 0.25, jnp.float32), 1, H_PAD)

    for name, k_wl, k_wr in (("sage1", ks[1], ks[2]), ("sage2", ks[3], ks[4])):
        wl, bl = lin(k_wl, hidden, hidden)   # lin_l (with bias)
        wr, _ = lin(k_wr, hidden, hidden)    # lin_r (no bias)
        p[name + "_wl"] = padw(wl, H_PAD, H_PAD)
        p[name + "_bl"] = padw(bl, 1, H_PAD)
        p[name + "_wr"] = padw(wr, H_PAD, H_PAD)
        p[name + "_a"] = padw(jnp.full((1, hidden), 0.25, jnp.float32), 1, H_PAD)

    fp_w, fp_b = lin(ks[5], 2048, hidden)
    p["fp_w"] = padw(fp_w, 2048, H_PAD)
    p["fp_b"] = padw(fp_b, 1, H_PAD)
    p["fp_a"] = padw(jnp.full((1, hidden), 0.25, jnp.float32), 1, H_PAD)

    post_w, post_b = lin(ks[6], 2 * hidden, out_channels)
    # Split post_mp weight so the concat([g, fp_emb]) disappears in-kernel.
    p["post_wg"] = padw(post_w[:hidden], H_PAD, OUT_PAD)
    p["post_wfp"] = padw(post_w[hidden:], H_PAD, OUT_PAD)
    p["post_b"] = padw(post_b, 1, OUT_PAD)
    return p


# ---------------------------------------------------------------------------
# Forward
# ---------------------------------------------------------------------------
def _tile_size(n_pad, target=512):
    # n_pad is a multiple of 128.  Pick the largest tile <= target that divides
    # n_pad so node padding stays decoupled from the tile size (adjacency bytes
    # stay ~N^2).  target=512 amortizes the ~0.35 us per-grid-step overhead and
    # double-buffers comfortably under the default scoped VMEM on every
    # generation; raise toward 1024-2048 for v7x if tuning there specifically.
    if n_pad <= target:
        return n_pad
    t = target
    while n_pad % t != 0:
        t //= 2
    return t


def graphsage_forward(params, x, fp, edge_index, batch, num_graphs, out_channels):
    n, _ = x.shape
    n_pad = pl.cdiv(n, 128) * 128
    blk = _tile_size(n_pad)

    # Dense sum-aggregation adjacency, A[dst, src] += 1, built directly in bf16
    # (no N^2 f32 intermediate).  Exact for per-edge multiplicities <= 256.
    # The data-dependent scatter-add stays in plain JAX.
    src, dst = edge_index[0], edge_index[1]
    adj = jnp.zeros((n_pad, n_pad), jnp.bfloat16).at[dst, src].add(1.0)

    x_pad = jnp.pad(x, ((0, n_pad - n), (0, 0)))

    # Row-normalized membership matrix for global_mean_pool; padded node columns
    # are zero so padded nodes never contribute.
    onehot = (batch[None, :] == jnp.arange(num_graphs)[:, None]).astype(jnp.float32)
    counts = jnp.maximum(onehot.sum(axis=1, keepdims=True), 1.0)
    pool = jnp.pad(onehot / counts, ((0, 0), (0, n_pad - n)))

    # pre_mp + SAGEConv1 + PReLU (one kernel, one bf16 [N, H] HBM write).
    h1 = pre_sage_layer(adj, x_pad,
                        params["pre_w"], params["pre_b"], params["pre_a"],
                        params["sage1_wl"], params["sage1_bl"],
                        params["sage1_wr"], params["sage1_a"],
                        tm=blk, tk=blk)

    # SAGEConv2 + PReLU + global_mean_pool (one kernel, only per-dst-tile
    # [B, H] partials written; tiny sum in plain JAX).
    g_partials = sage_pool_layer(adj, h1, pool,
                                 params["sage2_wl"], params["sage2_bl"],
                                 params["sage2_wr"], params["sage2_a"],
                                 tm=blk, tk=blk)
    g = jnp.sum(g_partials, axis=0)

    # fingerprint Linear + PReLU + post_mp Linear (split-weight concat), fused.
    out_pad = tail_layer(g, fp, params["fp_w"], params["fp_b"], params["fp_a"],
                         params["post_wg"], params["post_wfp"], params["post_b"])
    return out_pad[:, :out_channels]


if __name__ == "__main__":
    key = jax.random.PRNGKey(0)
    in_channels, hidden, out_channels = 16, 32, 4
    n_nodes, n_graphs = 12, 2

    kx, kfp, kp = jax.random.split(key, 3)
    x = jax.random.normal(kx, (n_nodes, in_channels), jnp.float32)
    fp = (jax.random.uniform(kfp, (n_graphs, 2048)) > 0.5).astype(jnp.float32)
    # Simple edge list (src row 0, dst row 1), all edges intra-graph.
    edge_index = jnp.array(
        [[0, 1, 1, 2, 3, 4, 2, 5, 6, 7, 7, 8, 9, 10, 8, 11],
         [1, 0, 2, 1, 4, 3, 3, 0, 7, 6, 8, 7, 10, 9, 9, 6]], dtype=jnp.int32)
    batch = jnp.array([0, 0, 0, 0, 0, 0, 1, 1, 1, 1, 1, 1], dtype=jnp.int32)

    params = init_params(kp, in_channels, hidden, out_channels)
    out = graphsage_forward(params, x, fp, edge_index, batch, n_graphs, out_channels)
    jax.block_until_ready(out)
    assert out.shape == (n_graphs, out_channels) and out.dtype == jnp.float32
    print("KERNEL_OK")
</pallas_src>

<mosaic_0001>
module attributes {stable_mosaic.version = 11 : i64} {
  func.func @_pre_sage_kernel(%arg0: i32, %arg1: i32, %arg2: memref<128x128xbf16, #tpu.memory_space<vmem>>, %arg3: memref<128x16xf32, #tpu.memory_space<vmem>>, %arg4: memref<128x16xf32, #tpu.memory_space<vmem>>, %arg5: memref<16x128xf32, #tpu.memory_space<vmem>>, %arg6: memref<1x128xf32, #tpu.memory_space<vmem>>, %arg7: memref<1x128xf32, #tpu.memory_space<vmem>>, %arg8: memref<128x128xf32, #tpu.memory_space<vmem>>, %arg9: memref<1x128xf32, #tpu.memory_space<vmem>>, %arg10: memref<128x128xf32, #tpu.memory_space<vmem>>, %arg11: memref<1x128xf32, #tpu.memory_space<vmem>>, %arg12: memref<128x128xbf16, #tpu.memory_space<vmem>>, %arg13: memref<128x128xf32, #tpu.memory_space<vmem>>) attributes {dimension_semantics = [#tpu.dimension_semantics<parallel>, #tpu.dimension_semantics<arbitrary>], iteration_bounds = array<i64: 1, 1>, scalar_prefetch = 0 : i64, scratch_operands = 1 : i64, tpu.core_type = #tpu.core_type<tc>, window_params = [{transform_indices = @transform_0, window_bounds = array<i64: 128, 128>}, {transform_indices = @transform_1, window_bounds = array<i64: 128, 16>}, {transform_indices = @transform_2, window_bounds = array<i64: 128, 16>}, {pipeline_mode = #tpu.pipeline_mode<synchronous>, transform_indices = @transform_3, window_bounds = array<i64: 16, 128>}, {pipeline_mode = #tpu.pipeline_mode<synchronous>, transform_indices = @transform_4, window_bounds = array<i64: 1, 128>}, {pipeline_mode = #tpu.pipeline_mode<synchronous>, transform_indices = @transform_5, window_bounds = array<i64: 1, 128>}, {pipeline_mode = #tpu.pipeline_mode<synchronous>, transform_indices = @transform_6, window_bounds = array<i64: 128, 128>}, {pipeline_mode = #tpu.pipeline_mode<synchronous>, transform_indices = @transform_7, window_bounds = array<i64: 1, 128>}, {pipeline_mode = #tpu.pipeline_mode<synchronous>, transform_indices = @transform_8, window_bounds = array<i64: 128, 128>}, {pipeline_mode = #tpu.pipeline_mode<synchronous>, transform_indices = @transform_9, window_bounds = array<i64: 1, 128>}, {transform_indices = @transform_10, window_bounds = array<i64: 128, 128>}]} {
    %c0_i32 = arith.constant 0 : i32
    %0 = arith.cmpi eq, %arg1, %c0_i32 : i32
    %1 = arith.extui %0 : i1 to i32
    %c0_i32_0 = arith.constant 0 : i32
    %2 = arith.cmpi ne, %1, %c0_i32_0 : i32
    scf.if %2 {
      %cst_18 = arith.constant 0.000000e+00 : f32
      %24 = vector.broadcast %cst_18 : f32 to vector<128x128xf32>
      %c0_19 = arith.constant 0 : index
      %c0_20 = arith.constant 0 : index
      %25 = vector.load %arg13[%c0_19, %c0_20] : memref<128x128xf32, #tpu.memory_space<vmem>>, vector<128x128xf32>
      tpu.vector_store %arg13[%c0_19, %c0_20], %24 {strides = array<i32>} : memref<128x128xf32, #tpu.memory_space<vmem>>, vector<128x128xf32>,
    } else {
    }
    %c0 = arith.constant 0 : index
    %c0_1 = arith.constant 0 : index
    %3 = vector.load %arg3[%c0, %c0_1] : memref<128x16xf32, #tpu.memory_space<vmem>>, vector<128x16xf32>
    %c0_2 = arith.constant 0 : index
    %c0_3 = arith.constant 0 : index
    %4 = vector.load %arg5[%c0_2, %c0_3] : memref<16x128xf32, #tpu.memory_space<vmem>>, vector<16x128xf32>
    %cst = arith.constant dense<0.000000e+00> : vector<128x128xf32>
    %5 = tpu.matmul %3, %4, %cst {dimension_numbers = #tpu.dot_dimension_numbers<[1], [0], [0], [1], [0, 0, 1, 1], [], []>} : vector<128x16xf32>, vector<16x128xf32>, vector<128x128xf32> -> vector<128x128xf32>
    %c0_4 = arith.constant 0 : index
    %c0_5 = arith.constant 0 : index
    %6 = vector.load %arg6[%c0_4, %c0_5] : memref<1x128xf32, #tpu.memory_space<vmem>>, vector<1x128xf32>
    %7 = vector.broadcast %6 : vector<1x128xf32> to vector<128x128xf32>
    %8 = arith.addf %5, %7 : vector<128x128xf32>
    %c0_6 = arith.constant 0 : index
    %c0_7 = arith.constant 0 : index
    %9 = vector.load %arg7[%c0_6, %c0_7] : memref<1x128xf32, #tpu.memory_space<vmem>>, vector<1x128xf32>
    %cst_8 = arith.constant 0.000000e+00 : f32
    %10 = vector.broadcast %cst_8 : f32 to vector<128x128xf32>
    %11 = arith.cmpf ogt, %8, %10 : vector<128x128xf32>
    %12 = vector.broadcast %9 : vector<1x128xf32> to vector<128x128xf32>
    %13 = arith.mulf %12, %8 : vector<128x128xf32>
    %14 = arith.select %11, %8, %13 : vector<128x128xi1>, vector<128x128xf32>
    %c0_9 = arith.constant 0 : index
    %c0_10 = arith.constant 0 : index
    %15 = vector.load %arg13[%c0_9, %c0_10] : memref<128x128xf32, #tpu.memory_space<vmem>>, vector<128x128xf32>
    %c0_11 = arith.constant 0 : index
    %c0_12 = arith.constant 0 : index
    %16 = vector.load %arg2[%c0_11, %c0_12] : memref<128x128xbf16, #tpu.memory_space<vmem>>, vector<128x128xbf16>
    %17 = arith.truncf %14 : vector<128x128xf32> to vector<128x128xbf16>
    %cst_13 = arith.constant dense<0.000000e+00> : vector<128x128xf32>
    %18 = tpu.matmul %16, %17, %cst_13 {dimension_numbers = #tpu.dot_dimension_numbers<[1], [0], [0], [1], [0, 0, 1, 1], [], []>} : vector<128x128xbf16>, vector<128x128xbf16>, vector<128x128xf32> -> vector<128x128xf32>
    %19 = arith.addf %15, %18 : vector<128x128xf32>
    %c0_14 = arith.constant 0 : index
    %c0_15 = arith.constant 0 : index
    %20 = vector.load %arg13[%c0_14, %c0_15] : memref<128x128xf32, #tpu.memory_space<vmem>>, vector<128x128xf32>
    tpu.vector_store %arg13[%c0_14, %c0_15], %19 {strides = array<i32>} : memref<128x128xf32, #tpu.memory_space<vmem>>, vector<128x128xf32>,
    %c0_i32_16 = arith.constant 0 : i32
    %21 = arith.cmpi eq, %arg1, %c0_i32_16 : i32
    %22 = arith.extui %21 : i1 to i32
    %c0_i32_17 = arith.constant 0 : i32
    %23 = arith.cmpi ne, %22, %c0_i32_17 : i32
    scf.if %23 {
      %c0_18 = arith.constant 0 : index
      %c0_19 = arith.constant 0 : index
      %24 = vector.load %arg4[%c0_18, %c0_19] : memref<128x16xf32, #tpu.memory_space<vmem>>, vector<128x16xf32>
      %c0_20 = arith.constant 0 : index
      %c0_21 = arith.constant 0 : index
      %25 = vector.load %arg5[%c0_20, %c0_21] : memref<16x128xf32, #tpu.memory_space<vmem>>, vector<16x128xf32>
      %cst_22 = arith.constant dense<0.000000e+00> : vector<128x128xf32>
      %26 = tpu.matmul %24, %25, %cst_22 {dimension_numbers = #tpu.dot_dimension_numbers<[1], [0], [0], [1], [0, 0, 1, 1], [], []>} : vector<128x16xf32>, vector<16x128xf32>, vector<128x128xf32> -> vector<128x128xf32>
      %c0_23 = arith.constant 0 : index
      %c0_24 = arith.constant 0 : index
      %27 = vector.load %arg6[%c0_23, %c0_24] : memref<1x128xf32, #tpu.memory_space<vmem>>, vector<1x128xf32>
      %28 = vector.broadcast %27 : vector<1x128xf32> to vector<128x128xf32>
      %29 = arith.addf %26, %28 : vector<128x128xf32>
      %c0_25 = arith.constant 0 : index
      %c0_26 = arith.constant 0 : index
      %30 = vector.load %arg7[%c0_25, %c0_26] : memref<1x128xf32, #tpu.memory_space<vmem>>, vector<1x128xf32>
      %cst_27 = arith.constant 0.000000e+00 : f32
      %31 = vector.broadcast %cst_27 : f32 to vector<128x128xf32>
      %32 = arith.cmpf ogt, %29, %31 : vector<128x128xf32>
      %33 = vector.broadcast %30 : vector<1x128xf32> to vector<128x128xf32>
      %34 = arith.mulf %33, %29 : vector<128x128xf32>
      %35 = arith.select %32, %29, %34 : vector<128x128xi1>, vector<128x128xf32>
      %c0_28 = arith.constant 0 : index
      %c0_29 = arith.constant 0 : index
      %36 = vector.load %arg13[%c0_28, %c0_29] : memref<128x128xf32, #tpu.memory_space<vmem>>, vector<128x128xf32>
      %c0_30 = arith.constant 0 : index
      %c0_31 = arith.constant 0 : index
      %37 = vector.load %arg8[%c0_30, %c0_31] : memref<128x128xf32, #tpu.memory_space<vmem>>, vector<128x128xf32>
      %cst_32 = arith.constant dense<0.000000e+00> : vector<128x128xf32>
      %38 = tpu.matmul %36, %37, %cst_32 {dimension_numbers = #tpu.dot_dimension_numbers<[1], [0], [0], [1], [0, 0, 1, 1], [], []>} : vector<128x128xf32>, vector<128x128xf32>, vector<128x128xf32> -> vector<128x128xf32>
      %c0_33 = arith.constant 0 : index
      %c0_34 = arith.constant 0 : index
      %39 = vector.load %arg9[%c0_33, %c0_34] : memref<1x128xf32, #tpu.memory_space<vmem>>, vector<1x128xf32>
      %40 = vector.broadcast %39 : vector<1x128xf32> to vector<128x128xf32>
      %41 = arith.addf %38, %40 : vector<128x128xf32>
      %c0_35 = arith.constant 0 : index
      %c0_36 = arith.constant 0 : index
      %42 = vector.load %arg10[%c0_35, %c0_36] : memref<128x128xf32, #tpu.memory_space<vmem>>, vector<128x128xf32>
      %cst_37 = arith.constant dense<0.000000e+00> : vector<128x128xf32>
      %43 = tpu.matmul %35, %42, %cst_37 {dimension_numbers = #tpu.dot_dimension_numbers<[1], [0], [0], [1], [0, 0, 1, 1], [], []>} : vector<128x128xf32>, vector<128x128xf32>, vector<128x128xf32> -> vector<128x128xf32>
      %44 = arith.addf %41, %43 : vector<128x128xf32>
      %c0_38 = arith.constant 0 : index
      %c0_39 = arith.constant 0 : index
      %45 = vector.load %arg11[%c0_38, %c0_39] : memref<1x128xf32, #tpu.memory_space<vmem>>, vector<1x128xf32>
      %cst_40 = arith.constant 0.000000e+00 : f32
      %46 = vector.broadcast %cst_40 : f32 to vector<128x128xf32>
      %47 = arith.cmpf ogt, %44, %46 : vector<128x128xf32>
      %48 = vector.broadcast %45 : vector<1x128xf32> to vector<128x128xf32>
      %49 = arith.mulf %48, %44 : vector<128x128xf32>
      %50 = arith.select %47, %44, %49 : vector<128x128xi1>, vector<128x128xf32>
      %51 = arith.truncf %50 : vector<128x128xf32> to vector<128x128xbf16>
      %c0_41 = arith.constant 0 : index
      %c0_42 = arith.constant 0 : index
      %52 = vector.load %arg12[%c0_41, %c0_42] : memref<128x128xbf16, #tpu.memory_space<vmem>>, vector<128x128xbf16>
      tpu.vector_store %arg12[%c0_41, %c0_42], %51 {strides = array<i32>} : memref<128x128xbf16, #tpu.memory_space<vmem>>, vector<128x128xbf16>,
    } else {
    }
    return
  }
  func.func @transform_0(%arg0: i32, %arg1: i32) -> (i32, i32) {
    %c0_i32 = arith.constant 0 : i32
    return %arg0, %arg1 : i32, i32
  }
  func.func @transform_1(%arg0: i32, %arg1: i32) -> (i32, i32) {
    %c0_i32 = arith.constant 0 : i32
    %c0_i32_0 = arith.constant 0 : i32
    return %arg1, %c0_i32 : i32, i32
  }
  func.func @transform_2(%arg0: i32, %arg1: i32) -> (i32, i32) {
    %c0_i32 = arith.constant 0 : i32
    %c0_i32_0 = arith.constant 0 : i32
    return %arg0, %c0_i32 : i32, i32
  }
  func.func @transform_3(%arg0: i32, %arg1: i32) -> (i32, i32) {
    %c0_i32 = arith.constant 0 : i32
    %c0_i32_0 = arith.constant 0 : i32
    %c0_i32_1 = arith.constant 0 : i32
    return %c0_i32, %c0_i32_0 : i32, i32
  }
  func.func @transform_4(%arg0: i32, %arg1: i32) -> (i32, i32) {
    %c0_i32 = arith.constant 0 : i32
    %c0_i32_0 = arith.constant 0 : i32
    %c0_i32_1 = arith.constant 0 : i32
    return %c0_i32, %c0_i32_0 : i32, i32
  }
  func.func @transform_5(%arg0: i32, %arg1: i32) -> (i32, i32) {
    %c0_i32 = arith.constant 0 : i32
    %c0_i32_0 = arith.constant 0 : i32
    %c0_i32_1 = arith.constant 0 : i32
    return %c0_i32, %c0_i32_0 : i32, i32
  }
  func.func @transform_6(%arg0: i32, %arg1: i32) -> (i32, i32) {
    %c0_i32 = arith.constant 0 : i32
    %c0_i32_0 = arith.constant 0 : i32
    %c0_i32_1 = arith.constant 0 : i32
    return %c0_i32, %c0_i32_0 : i32, i32
  }
  func.func @transform_7(%arg0: i32, %arg1: i32) -> (i32, i32) {
    %c0_i32 = arith.constant 0 : i32
    %c0_i32_0 = arith.constant 0 : i32
    %c0_i32_1 = arith.constant 0 : i32
    return %c0_i32, %c0_i32_0 : i32, i32
  }
  func.func @transform_8(%arg0: i32, %arg1: i32) -> (i32, i32) {
    %c0_i32 = arith.constant 0 : i32
    %c0_i32_0 = arith.constant 0 : i32
    %c0_i32_1 = arith.constant 0 : i32
    return %c0_i32, %c0_i32_0 : i32, i32
  }
  func.func @transform_9(%arg0: i32, %arg1: i32) -> (i32, i32) {
    %c0_i32 = arith.constant 0 : i32
    %c0_i32_0 = arith.constant 0 : i32
    %c0_i32_1 = arith.constant 0 : i32
    return %c0_i32, %c0_i32_0 : i32, i32
  }
  func.func @transform_10(%arg0: i32, %arg1: i32) -> (i32, i32) {
    %c0_i32 = arith.constant 0 : i32
    %c0_i32_0 = arith.constant 0 : i32
    return %arg0, %c0_i32 : i32, i32
  }
}

</mosaic_0001>

<llo_original>
// kernel: tpu_custom_call.1
$region0: #{tpu_custom_call.1}
  #allocation0 [shape = 'u32[]', space=smem, size = 0x4, offset = 0x4, fixed_abs, tag = 'smem constant byte address 0x4 - core index']
  #allocation1 [shape = 'u32[144,128]{1,0:T(1,128)}', space=vmem, size = 0x12000, scoped, tag = 'internal scratch']
  #allocation2 [shape = 'f32[128,128]{1,0:T(8,128)}', space=vmem, size = 0x10000, scoped, tag = 'scratch operand']
  %s0 = inlined_call_operand.hbm [shape: bf16[128,128], index: 0, kind: input, shape index: {}]
  %s1 = inlined_call_operand.vmem [shape: f32[128,16], index: 1, kind: input, shape index: {}]
  %s2 = inlined_call_operand.vmem [shape: f32[128,16], index: 2, kind: input, shape index: {}]
  %s3 = inlined_call_operand.vmem [shape: f32[16,128], index: 3, kind: input, shape index: {}]
  %s4 = inlined_call_operand.vmem [shape: f32[1,128], index: 4, kind: input, shape index: {}]
  %s5 = inlined_call_operand.vmem [shape: f32[1,128], index: 5, kind: input, shape index: {}]
  %s6 = inlined_call_operand.vmem [shape: f32[128,128], index: 6, kind: input, shape index: {}]
  %s7 = inlined_call_operand.vmem [shape: f32[1,128], index: 7, kind: input, shape index: {}]
  %s8 = inlined_call_operand.vmem [shape: f32[128,128], index: 8, kind: input, shape index: {}]
  %s9 = inlined_call_operand.vmem [shape: f32[1,128], index: 9, kind: input, shape index: {}]
  %s10 = inlined_call_operand.hbm [shape: bf16[128,128], index: 10, kind: output, shape index: {}]
  %s11 = sld [smem:[#allocation0]]
  $region62: #{tpu_custom_call.1} parent=0
    _
  %s13 = ssub.s32 1, %s11
  %s14 = scalar_select 0, %s13, %s11
  $region1: #{tpu_custom_call.1} parent=0
    #allocation3 [shape = 'u8[32768]{0}', space=vmem, size = 0x8000, scoped, tag = 'input window, operand 0, single buffered']
    #allocation4 [shape = 's32[1]{0}', space=sflag, size = 0x4, scoped, tag = 'scoped memory for tpu_custom_call.1']
    #allocation5 [shape = 's32[1]{0}', space=sflag, size = 0x4, scoped, tag = 'scoped memory for tpu_custom_call.1']
    #allocation6 [shape = 'u8[32768]{0}', space=vmem, size = 0x8000, scoped, tag = 'output window, operand 0, single buffered']
    %15 = vsyncpa [#allocation4], 0
    %16 = vsyncpa [#allocation5], 0
    // Predicated region
    $region2: #{tpu_custom_call.1} parent=1 // pred_check
      _
    $region3: #{tpu_custom_call.1} parent=1 // pred_check_branch
      %18 = sbr.rel (0) target = $region5
    $region4: #{tpu_custom_call.1} parent=1 // pred_region
      %s20 = ssub.s32 1024, 1024
      %21 = vsyncadd [#allocation4], %s20
      %s22 = sshll.u32 [#allocation3], 4
      %s23 = int_to_ptr.vmem [resolvable:$true] %s22
      %28 = dma.hbm_to_vmem [thread:$0]  %s0, 1024, %s23, [#allocation4], 64, 64, 4
    $region5: #{tpu_custom_call.1} parent=1 // pred_fallthru
      _
    // Predicated region
    $region6: #{tpu_custom_call.1} parent=1 // pred_check
      _
    $region7: #{tpu_custom_call.1} parent=1 // pred_check_branch
      %30 = sbr.rel (0) target = $region9
    $region8: #{tpu_custom_call.1} parent=1 // pred_region
      _
    $region9: #{tpu_custom_call.1} parent=1 // pred_fallthru
      _
    // Predicated region
    $region10: #{tpu_custom_call.1} parent=1 // pred_check
      _
    $region11: #{tpu_custom_call.1} parent=1 // pred_check_branch
      %32 = sbr.rel (0) target = $region13
    $region12: #{tpu_custom_call.1} parent=1 // pred_region
      _
    $region13: #{tpu_custom_call.1} parent=1 // pred_fallthru
      _
    // Predicated region
    $region14: #{tpu_custom_call.1} parent=1 // pred_check
      _
    $region15: #{tpu_custom_call.1} parent=1 // pred_check_branch
      %34 = sbr.rel (0) target = $region17
    $region16: #{tpu_custom_call.1} parent=1 // pred_region
      _
    $region17: #{tpu_custom_call.1} parent=1 // pred_fallthru
      _
    // Predicated region
    $region18: #{tpu_custom_call.1} parent=1 // pred_check
      _
    $region19: #{tpu_custom_call.1} parent=1 // pred_check_branch
      %36 = sbr.rel (0) target = $region21
    $region20: #{tpu_custom_call.1} parent=1 // pred_region
      _
    $region21: #{tpu_custom_call.1} parent=1 // pred_fallthru
      _
    // Predicated region
    $region22: #{tpu_custom_call.1} parent=1 // pred_check
      _
    $region23: #{tpu_custom_call.1} parent=1 // pred_check_branch
      %38 = sbr.rel (0) target = $region25
    $region24: #{tpu_custom_call.1} parent=1 // pred_region
      _
    $region25: #{tpu_custom_call.1} parent=1 // pred_fallthru
      _
    // Predicated region
    $region26: #{tpu_custom_call.1} parent=1 // pred_check
      _
    $region27: #{tpu_custom_call.1} parent=1 // pred_check_branch
      %40 = sbr.rel (0) target = $region29
    $region28: #{tpu_custom_call.1} parent=1 // pred_region
      _
    $region29: #{tpu_custom_call.1} parent=1 // pred_fallthru
      _
    // Predicated region
    $region30: #{tpu_custom_call.1} parent=1 // pred_check
      _
    $region31: #{tpu_custom_call.1} parent=1 // pred_check_branch
      %42 = sbr.rel (0) target = $region33
    $region32: #{tpu_custom_call.1} parent=1 // pred_region
      _
    $region33: #{tpu_custom_call.1} parent=1 // pred_fallthru
      _
    // Predicated region
    $region34: #{tpu_custom_call.1} parent=1 // pred_check
      _
    $region35: #{tpu_custom_call.1} parent=1 // pred_check_branch
      %44 = sbr.rel (0) target = $region37
    $region36: #{tpu_custom_call.1} parent=1 // pred_region
      _
    $region37: #{tpu_custom_call.1} parent=1 // pred_fallthru
      _
    // Predicated region
    $region38: #{tpu_custom_call.1} parent=1 // pred_check
      _
    $region39: #{tpu_custom_call.1} parent=1 // pred_check_branch
      %46 = sbr.rel (0) target = $region41
    $region40: #{tpu_custom_call.1} parent=1 // pred_region
      _
    $region41: #{tpu_custom_call.1} parent=1 // pred_fallthru
      _
    // Predicated region
    $region42: #{tpu_custom_call.1} parent=1 // pred_check
      _
    $region43: #{tpu_custom_call.1} parent=1 // pred_check_branch
      %48 = sbr.rel (0) target = $region45
    $region44: #{tpu_custom_call.1} parent=1 // pred_region
      %49 = dma.done [#allocation4], 1024
    $region45: #{tpu_custom_call.1} parent=1 // pred_fallthru
      _
    %p51 = scmp.eq.s32.totalorder 0, 0
    // Predicated region
    $region46: #{tpu_custom_call.1} parent=1 // pred_check
      %p52 = pneg %p51
    $region47: #{tpu_custom_call.1} parent=1 // pred_check_branch
      %54 = sbr.rel (%p52) target = $region49
    $region48: #{tpu_custom_call.1} parent=1 // pred_region
      %55 = vst [vmem:[#allocation2] sm:$0xff] 0.0
      %56 = vst [vmem:[#allocation2 + $0x8] sm:$0xff] 0.0
      %57 = vst [vmem:[#allocation2 + $0x10] sm:$0xff] 0.0
      %58 = vst [vmem:[#allocation2 + $0x18] sm:$0xff] 0.0
      %59 = vst [vmem:[#allocation2 + $0x20] sm:$0xff] 0.0
      %60 = vst [vmem:[#allocation2 + $0x28] sm:$0xff] 0.0
      %61 = vst [vmem:[#allocation2 + $0x30] sm:$0xff] 0.0
      %62 = vst [vmem:[#allocation2 + $0x38] sm:$0xff] 0.0
      %63 = vst [vmem:[#allocation2 + $0x40] sm:$0xff] 0.0
      %64 = vst [vmem:[#allocation2 + $0x48] sm:$0xff] 0.0
      %65 = vst [vmem:[#allocation2 + $0x50] sm:$0xff] 0.0
      %66 = vst [vmem:[#allocation2 + $0x58] sm:$0xff] 0.0
      %67 = vst [vmem:[#allocation2 + $0x60] sm:$0xff] 0.0
      %68 = vst [vmem:[#allocation2 + $0x68] sm:$0xff] 0.0
      %69 = vst [vmem:[#allocation2 + $0x70] sm:$0xff] 0.0
      %70 = vst [vmem:[#allocation2 + $0x78] sm:$0xff] 0.0
    $region49: #{tpu_custom_call.1} parent=1 // pred_fallthru
      _
    %v71 = vld [vmem:[%s1] sm:$0xff]
    %v72 = vld [vmem:[%s1 + $0x8] sm:$0xff]
    %v73 = vld [vmem:[%s1 + $0x10] sm:$0xff]
    %v74 = vld [vmem:[%s1 + $0x18] sm:$0xff]
    %v75 = vld [vmem:[%s1 + $0x20] sm:$0xff]
    %v76 = vld [vmem:[%s1 + $0x28] sm:$0xff]
    %v77 = vld [vmem:[%s1 + $0x30] sm:$0xff]
    %v78 = vld [vmem:[%s1 + $0x38] sm:$0xff]
    %v79 = vld [vmem:[%s1 + $0x40] sm:$0xff]
    %v80 = vld [vmem:[%s1 + $0x48] sm:$0xff]
    %v81 = vld [vmem:[%s1 + $0x50] sm:$0xff]
    %v82 = vld [vmem:[%s1 + $0x58] sm:$0xff]
    %v83 = vld [vmem:[%s1 + $0x60] sm:$0xff]
    %v84 = vld [vmem:[%s1 + $0x68] sm:$0xff]
    %v85 = vld [vmem:[%s1 + $0x70] sm:$0xff]
    %v86 = vld [vmem:[%s1 + $0x78] sm:$0xff]
    %v87 = vld [vmem:[%s3] sm:$0xff]
    %v88 = vld [vmem:[%s3 + $0x8] sm:$0xff]
    %v89 = vld [vmem:[%s4] sm:$0x1]
    %v91 = vlaneseq
    %v92 = vshrl.u32 %v91, 7
    %v93 = vsub.s32 0, %v92
    %v94 = vrot.slane %v89, %v93
    %vm96 = vcmask 130048
    %v98 = vsel %vm96, %v71, 0
    %v101 = vsel %vm96, %v72, 0
    %v104 = vsel %vm96, %v73, 0
    %v107 = vsel %vm96, %v74, 0
    %v110 = vsel %vm96, %v75, 0
    %v113 = vsel %vm96, %v76, 0
    %v116 = vsel %vm96, %v77, 0
    %v119 = vsel %vm96, %v78, 0
    %v122 = vsel %vm96, %v79, 0
    %v125 = vsel %vm96, %v80, 0
    %v128 = vsel %vm96, %v81, 0
    %v131 = vsel %vm96, %v82, 0
    %v134 = vsel %vm96, %v83, 0
    %v137 = vsel %vm96, %v84, 0
    %v140 = vsel %vm96, %v85, 0
    %v143 = vsel %vm96, %v86, 0
    %145 = vmatprep.subr.mxu0 0.0
    %146 = vmatpush1.msra.mxu0 %v87
    %147 = vmatprep.subr.mxu0 0.0
    %148 = vmatpush1.msra.mxu0 %v88
    %149 = vmatprep.subr.mxu0 0.0
    %150 = vmatpush1.msra.mxu0 0.0
    %151 = vmatprep.subr.mxu0 0.0
    %152 = vmatpush1.msra.mxu0 0.0
    %153 = vmatprep.subr.mxu0 0.0
    %154 = vmatpush1.msra.mxu0 0.0
    %155 = vmatprep.subr.mxu0 0.0
    %156 = vmatpush1.msra.mxu0 0.0
    %157 = vmatprep.subr.mxu0 0.0
    %158 = vmatpush1.msra.mxu0 0.0
    %159 = vmatprep.subr.mxu0 0.0
    %160 = vmatpush1.msra.mxu0 0.0
    %161 = vmatprep.subr.mxu0 0.0
    %162 = vmatpush1.msra.mxu0 0.0
    %163 = vmatprep.subr.mxu0 0.0
    %164 = vmatpush1.msra.mxu0 0.0
    %165 = vmatprep.subr.mxu0 0.0
    %166 = vmatpush1.msra.mxu0 0.0
    %167 = vmatprep.subr.mxu0 0.0
    %168 = vmatpush1.msra.mxu0 0.0
    %169 = vmatprep.subr.mxu0 0.0
    %170 = vmatpush1.msra.mxu0 0.0
    %171 = vmatprep.subr.mxu0 0.0
    %172 = vmatpush1.msra.mxu0 0.0
    %173 = vmatprep.subr.mxu0 0.0
    %174 = vmatpush1.msra.mxu0 0.0
    %175 = vmatprep.subr.mxu0 0.0
    %176 = vmatpush1.msra.mxu0 0.0
    %177 = vmatprep.subr.mxu0 0.0
    %178 = vmatpush1.msra.mxu0 0.0
    %179 = vmatprep.subr.mxu0 0.0
    %180 = vmatpush1.msra.mxu0 0.0
    %181 = vmatprep.subr.mxu0 0.0
    %182 = vmatpush1.msra.mxu0 0.0
    %183 = vmatprep.subr.mxu0 0.0
    %184 = vmatpush1.msra.mxu0 0.0
    %185 = vmatprep.subr.mxu0 0.0
    %186 = vmatpush1.msra.mxu0 0.0
    %187 = vmatprep.subr.mxu0 0.0
    %188 = vmatpush1.msra.mxu0 0.0
    %189 = vmatprep.subr.mxu0 0.0
    %190 = vmatpush1.msra.mxu0 0.0
    %191 = vmatprep.subr.mxu0 0.0
    %192 = vmatpush1.msra.mxu0 0.0
    %193 = vmatprep.subr.mxu0 0.0
    %194 = vmatpush1.msra.mxu0 0.0
    %195 = vmatprep.subr.mxu0 0.0
    %196 = vmatpush1.msra.mxu0 0.0
    %197 = vmatprep.subr.mxu0 0.0
    %198 = vmatpush1.msra.mxu0 0.0
    %199 = vmatprep.subr.mxu0 0.0
    %200 = vmatpush1.msra.mxu0 0.0
    %201 = vmatprep.subr.mxu0 0.0
    %202 = vmatpush1.msra.mxu0 0.0
    %203 = vmatprep.subr.mxu0 0.0
    %204 = vmatpush1.msra.mxu0 0.0
    %205 = vmatprep.subr.mxu0 0.0
    %206 = vmatpush1.msra.mxu0 0.0
    %207 = vmatprep.subr.mxu0 0.0
    %208 = vmatpush1.msra.mxu0 0.0
    %209 = vmatprep.mubr.f32.mxu0 0.0
    %210 = vmatmul.mubr.f32.gmra.mrb[0].mxu0 %v98
    %v211 = vpop.f32.mrb[0].mxu0
    %v212 = vadd.f32 %v94, %v211
    %v213 = vpop.f32.mrb[0].mxu0
    %214 = vmatprep.mubr.f32.mxu0 0.0
    %215 = vmatmul.mubr.f32.gmra.mrb[0].mxu0 %v101
    %v216 = vpop.f32.mrb[0].mxu0
    %v217 = vadd.f32 %v94, %v216
    %v218 = vpop.f32.mrb[0].mxu0
    %219 = vmatprep.mubr.f32.mxu0 0.0
    %220 = vmatmul.mubr.f32.gmra.mrb[0].mxu0 %v104
    %v221 = vpop.f32.mrb[0].mxu0
    %v222 = vadd.f32 %v94, %v221
    %v223 = vpop.f32.mrb[0].mxu0
    %224 = vmatprep.mubr.f32.mxu0 0.0
    %225 = vmatmul.mubr.f32.gmra.mrb[0].mxu0 %v107
    %v226 = vpop.f32.mrb[0].mxu0
    %v227 = vadd.f32 %v94, %v226
    %v228 = vpop.f32.mrb[0].mxu0
    %229 = vmatprep.mubr.f32.mxu0 0.0
    %230 = vmatmul.mubr.f32.gmra.mrb[0].mxu0 %v110
    %v231 = vpop.f32.mrb[0].mxu0
    %v232 = vadd.f32 %v94, %v231
    %v233 = vpop.f32.mrb[0].mxu0
    %234 = vmatprep.mubr.f32.mxu0 0.0
    %235 = vmatmul.mubr.f32.gmra.mrb[0].mxu0 %v113
    %v236 = vpop.f32.mrb[0].mxu0
    %v237 = vadd.f32 %v94, %v236
    %v238 = vpop.f32.mrb[0].mxu0
    %239 = vmatprep.mubr.f32.mxu0 0.0
    %240 = vmatmul.mubr.f32.gmra.mrb[0].mxu0 %v116
    %v241 = vpop.f32.mrb[0].mxu0
    %v242 = vadd.f32 %v94, %v241
    %v243 = vpop.f32.mrb[0].mxu0
    %244 = vmatprep.mubr.f32.mxu0 0.0
    %245 = vmatmul.mubr.f32.gmra.mrb[0].mxu0 %v119
    %v246 = vpop.f32.mrb[0].mxu0
    %v247 = vadd.f32 %v94, %v246
    %v248 = vpop.f32.mrb[0].mxu0
    %249 = vmatprep.mubr.f32.mxu0 0.0
    %250 = vmatmul.mubr.f32.gmra.mrb[0].mxu0 %v122
    %v251 = vpop.f32.mrb[0].mxu0
    %v252 = vadd.f32 %v94, %v251
    %v253 = vpop.f32.mrb[0].mxu0
    %254 = vmatprep.mubr.f32.mxu0 0.0
    %255 = vmatmul.mubr.f32.gmra.mrb[0].mxu0 %v125
    %v256 = vpop.f32.mrb[0].mxu0
    %v257 = vadd.f32 %v94, %v256
    %v258 = vpop.f32.mrb[0].mxu0
    %259 = vmatprep.mubr.f32.mxu0 0.0
    %260 = vmatmul.mubr.f32.gmra.mrb[0].mxu0 %v128
    %v261 = vpop.f32.mrb[0].mxu0
    %v262 = vadd.f32 %v94, %v261
    %v263 = vpop.f32.mrb[0].mxu0
    %264 = vmatprep.mubr.f32.mxu0 0.0
    %265 = vmatmul.mubr.f32.gmra.mrb[0].mxu0 %v131
    %v266 = vpop.f32.mrb[0].mxu0
    %v267 = vadd.f32 %v94, %v266
    %v268 = vpop.f32.mrb[0].mxu0
    %269 = vmatprep.mubr.f32.mxu0 0.0
    %270 = vmatmul.mubr.f32.gmra.mrb[0].mxu0 %v134
    %v271 = vpop.f32.mrb[0].mxu0
    %v272 = vadd.f32 %v94, %v271
    %v273 = vpop.f32.mrb[0].mxu0
    %274 = vmatprep.mubr.f32.mxu0 0.0
    %275 = vmatmul.mubr.f32.gmra.mrb[0].mxu0 %v137
    %v276 = vpop.f32.mrb[0].mxu0
    %v277 = vadd.f32 %v94, %v276
    %v278 = vpop.f32.mrb[0].mxu0
    %279 = vmatprep.mubr.f32.mxu0 0.0
    %280 = vmatmul.mubr.f32.gmra.mrb[0].mxu0 %v140
    %v281 = vpop.f32.mrb[0].mxu0
    %v282 = vadd.f32 %v94, %v281
    %v283 = vpop.f32.mrb[0].mxu0
    %284 = vmatprep.mubr.f32.mxu0 0.0
    %285 = vmatmul.mubr.f32.gmra.mrb[0].mxu0 %v143
    %v286 = vpop.f32.mrb[0].mxu0
    %v287 = vadd.f32 %v94, %v286
    %v288 = vpop.f32.mrb[0].mxu0
    %289 = vdwg.mxu0
    %v290 = vld [vmem:[%s5] sm:$0x1]
    %vm291 = vcmp.gt.f32.partialorder %v212, 0.0
    %vm292 = vcmp.gt.f32.partialorder %v217, 0.0
    %vm293 = vcmp.gt.f32.partialorder %v222, 0.0
    %vm294 = vcmp.gt.f32.partialorder %v227, 0.0
    %vm295 = vcmp.gt.f32.partialorder %v232, 0.0
    %vm296 = vcmp.gt.f32.partialorder %v237, 0.0
    %vm297 = vcmp.gt.f32.partialorder %v242, 0.0
    %vm298 = vcmp.gt.f32.partialorder %v247, 0.0
    %vm299 = vcmp.gt.f32.partialorder %v252, 0.0
    %vm300 = vcmp.gt.f32.partialorder %v257, 0.0
    %vm301 = vcmp.gt.f32.partialorder %v262, 0.0
    %vm302 = vcmp.gt.f32.partialorder %v267, 0.0
    %vm303 = vcmp.gt.f32.partialorder %v272, 0.0
    %vm304 = vcmp.gt.f32.partialorder %v277, 0.0
    %vm305 = vcmp.gt.f32.partialorder %v282, 0.0
    %vm306 = vcmp.gt.f32.partialorder %v287, 0.0
    %v308 = vlaneseq
    %v309 = vshrl.u32 %v308, 7
    %v310 = vsub.s32 0, %v309
    %v311 = vrot.slane %v290, %v310
    %v313 = vmul.f32 %v311, %v212
    %v314 = vmul.f32 %v311, %v217
    %v315 = vmul.f32 %v311, %v222
    %v316 = vmul.f32 %v311, %v227
    %v317 = vmul.f32 %v311, %v232
    %v318 = vmul.f32 %v311, %v237
    %v319 = vmul.f32 %v311, %v242
    %v320 = vmul.f32 %v311, %v247
    %v321 = vmul.f32 %v311, %v252
    %v322 = vmul.f32 %v311, %v257
    %v323 = vmul.f32 %v311, %v262
    %v324 = vmul.f32 %v311, %v267
    %v325 = vmul.f32 %v311, %v272
    %v326 = vmul.f32 %v311, %v277
    %v327 = vmul.f32 %v311, %v282
    %v328 = vmul.f32 %v311, %v287
    %v329 = vsel %vm291, %v212, %v313
    %v330 = vsel %vm292, %v217, %v314
    %v331 = vsel %vm293, %v222, %v315
    %v332 = vsel %vm294, %v227, %v316
    %v333 = vsel %vm295, %v232, %v317
    %v334 = vsel %vm296, %v237, %v318
    %v335 = vsel %vm297, %v242, %v319
    %v336 = vsel %vm298, %v247, %v320
    %v337 = vsel %vm299, %v252, %v321
    %v338 = vsel %vm300, %v257, %v322
    %v339 = vsel %vm301, %v262, %v323
    %v340 = vsel %vm302, %v267, %v324
    %v341 = vsel %vm303, %v272, %v325
    %v342 = vsel %vm304, %v277, %v326
    %v343 = vsel %vm305, %v282, %v327
    %v344 = vsel %vm306, %v287, %v328
    %v345 = vld [vmem:[#allocation2] sm:$0xff]
    %v346 = vld [vmem:[#allocation2 + $0x8] sm:$0xff]
    %v347 = vld [vmem:[#allocation2 + $0x10] sm:$0xff]
    %v348 = vld [vmem:[#allocation2 + $0x18] sm:$0xff]
    %v349 = vld [vmem:[#allocation2 + $0x20] sm:$0xff]
    %v350 = vld [vmem:[#allocation2 + $0x28] sm:$0xff]
    %v351 = vld [vmem:[#allocation2 + $0x30] sm:$0xff]
    %v352 = vld [vmem:[#allocation2 + $0x38] sm:$0xff]
    %v353 = vld [vmem:[#allocation2 + $0x40] sm:$0xff]
    %v354 = vld [vmem:[#allocation2 + $0x48] sm:$0xff]
    %v355 = vld [vmem:[#allocation2 + $0x50] sm:$0xff]
    %v356 = vld [vmem:[#allocation2 + $0x58] sm:$0xff]
    %v357 = vld [vmem:[#allocation2 + $0x60] sm:$0xff]
    %v358 = vld [vmem:[#allocation2 + $0x68] sm:$0xff]
    %v359 = vld [vmem:[#allocation2 + $0x70] sm:$0xff]
    %v360 = vld [vmem:[#allocation2 + $0x78] sm:$0xff]
    %v361 = vld [vmem:[#allocation3] sm:$0xf]
    %v362 = vld [vmem:[#allocation3 + $0x4] sm:$0xf]
    %v363 = vld [vmem:[#allocation3 + $0x8] sm:$0xf]
    %v364 = vld [vmem:[#allocation3 + $0xc] sm:$0xf]
    %v365 = vld [vmem:[#allocation3 + $0x10] sm:$0xf]
    %v366 = vld [vmem:[#allocation3 + $0x14] sm:$0xf]
    %v367 = vld [vmem:[#allocation3 + $0x18] sm:$0xf]
    %v368 = vld [vmem:[#allocation3 + $0x1c] sm:$0xf]
    %v369 = vld [vmem:[#allocation3 + $0x20] sm:$0xf]
    %v370 = vld [vmem:[#allocation3 + $0x24] sm:$0xf]
    %v371 = vld [vmem:[#allocation3 + $0x28] sm:$0xf]
    %v372 = vld [vmem:[#allocation3 + $0x2c] sm:$0xf]
    %v373 = vld [vmem:[#allocation3 + $0x30] sm:$0xf]
    %v374 = vld [vmem:[#allocation3 + $0x34] sm:$0xf]
    %v375 = vld [vmem:[#allocation3 + $0x38] sm:$0xf]
    %v376 = vld [vmem:[#allocation3 + $0x3c] sm:$0xf]
    %v377 = vpack.c.bf16 %v330, %v329
    %v378 = vpack.c.bf16 %v332, %v331
    %v379 = vpack.c.bf16 %v334, %v333
    %v380 = vpack.c.bf16 %v336, %v335
    %v381 = vpack.c.bf16 %v338, %v337
    %v382 = vpack.c.bf16 %v340, %v339
    %v383 = vpack.c.bf16 %v342, %v341
    %v384 = vpack.c.bf16 %v344, %v343
    %v401 = vunpack.c.l.b16 %v361
    %v402 = vunpack.c.l.b16 %v362
    %v403 = vunpack.c.l.b16 %v363
    %v404 = vunpack.c.l.b16 %v364
    %v405 = vunpack.c.l.b16 %v365
    %v406 = vunpack.c.l.b16 %v366
    %v407 = vunpack.c.l.b16 %v367
    %v408 = vunpack.c.l.b16 %v368
    %v409 = vunpack.c.l.b16 %v369
    %v410 = vunpack.c.l.b16 %v370
    %v411 = vunpack.c.l.b16 %v371
    %v412 = vunpack.c.l.b16 %v372
    %v413 = vunpack.c.l.b16 %v373
    %v414 = vunpack.c.l.b16 %v374
    %v415 = vunpack.c.l.b16 %v375
    %v416 = vunpack.c.l.b16 %v376
    %v417 = vpack.c.b16 %v402, %v401
    %v418 = vpack.c.b16 %v404, %v403
    %v419 = vpack.c.b16 %v406, %v405
    %v420 = vpack.c.b16 %v408, %v407
    %v421 = vpack.c.b16 %v410, %v409
    %v422 = vpack.c.b16 %v412, %v411
    %v423 = vpack.c.b16 %v414, %v413
    %v424 = vpack.c.b16 %v416, %v415
    %433 = vmatprep.subr.bf16.mxu0 0
    %434 = vmatpush1.bf16.msra.mxu0 %v377
    %435 = vmatprep.subr.bf16.mxu0 0
    %436 = vmatpush1.bf16.msra.mxu0 %v378
    %437 = vmatprep.subr.bf16.mxu0 0
    %438 = vmatpush1.bf16.msra.mxu0 %v379
    %439 = vmatprep.subr.bf16.mxu0 0
    %440 = vmatpush1.bf16.msra.mxu0 %v380
    %441 = vmatprep.subr.bf16.mxu0 0
    %442 = vmatpush1.bf16.msra.mxu0 %v381
    %443 = vmatprep.subr.bf16.mxu0 0
    %444 = vmatpush1.bf16.msra.mxu0 %v382
    %445 = vmatprep.subr.bf16.mxu0 0
    %446 = vmatpush1.bf16.msra.mxu0 %v383
    %447 = vmatprep.subr.bf16.mxu0 0
    %448 = vmatpush1.bf16.msra.mxu0 %v384
    %449 = vmatprep.subr.bf16.mxu0 0
    %450 = vmatpush1.bf16.msra.mxu0 0
    %451 = vmatprep.subr.bf16.mxu0 0
    %452 = vmatpush1.bf16.msra.mxu0 0
    %453 = vmatprep.subr.bf16.mxu0 0
    %454 = vmatpush1.bf16.msra.mxu0 0
    %455 = vmatprep.subr.bf16.mxu0 0
    %456 = vmatpush1.bf16.msra.mxu0 0
    %457 = vmatprep.subr.bf16.mxu0 0
    %458 = vmatpush1.bf16.msra.mxu0 0
    %459 = vmatprep.subr.bf16.mxu0 0
    %460 = vmatpush1.bf16.msra.mxu0 0
    %461 = vmatprep.subr.bf16.mxu0 0
    %462 = vmatpush1.bf16.msra.mxu0 0
    %463 = vmatprep.subr.bf16.mxu0 0
    %464 = vmatpush1.bf16.msra.mxu0 0
    %465 = vmatprep.mubr.bf16.mxu0 0
    %466 = vmatmul.mubr.bf16.gmra.mrb[0].mxu0 %v417
    %v467 = vpop.f32.mrb[0].mxu0
    %v468 = vadd.f32 0.0, %v467
    %v469 = vpop.f32.mrb[0].mxu0
    %v470 = vpop.f32.mrb[0].mxu0
    %v471 = vadd.f32 0.0, %v470
    %v472 = vpop.f32.mrb[0].mxu0
    %473 = vmatprep.mubr.bf16.mxu0 0
    %474 = vmatmul.mubr.bf16.gmra.mrb[0].mxu0 %v418
    %v475 = vpop.f32.mrb[0].mxu0
    %v476 = vadd.f32 0.0, %v475
    %v477 = vpop.f32.mrb[0].mxu0
    %v478 = vpop.f32.mrb[0].mxu0
    %v479 = vadd.f32 0.0, %v478
    %v480 = vpop.f32.mrb[0].mxu0
    %481 = vmatprep.mubr.bf16.mxu0 0
    %482 = vmatmul.mubr.bf16.gmra.mrb[0].mxu0 %v419
    %v483 = vpop.f32.mrb[0].mxu0
    %v484 = vadd.f32 0.0, %v483
    %v485 = vpop.f32.mrb[0].mxu0
    %v486 = vpop.f32.mrb[0].mxu0
    %v487 = vadd.f32 0.0, %v486
    %v488 = vpop.f32.mrb[0].mxu0
    %489 = vmatprep.mubr.bf16.mxu0 0
    %490 = vmatmul.mubr.bf16.gmra.mrb[0].mxu0 %v420
    %v491 = vpop.f32.mrb[0].mxu0
    %v492 = vadd.f32 0.0, %v491
    %v493 = vpop.f32.mrb[0].mxu0
    %v494 = vpop.f32.mrb[0].mxu0
    %v495 = vadd.f32 0.0, %v494
    %v496 = vpop.f32.mrb[0].mxu0
    %497 = vmatprep.mubr.bf16.mxu0 0
    %498 = vmatmul.mubr.bf16.gmra.mrb[0].mxu0 %v421
    %v499 = vpop.f32.mrb[0].mxu0
    %v500 = vadd.f32 0.0, %v499
    %v501 = vpop.f32.mrb[0].mxu0
    %v502 = vpop.f32.mrb[0].mxu0
    %v503 = vadd.f32 0.0, %v502
    %v504 = vpop.f32.mrb[0].mxu0
    %505 = vmatprep.mubr.bf16.mxu0 0
    %506 = vmatmul.mubr.bf16.gmra.mrb[0].mxu0 %v422
    %v507 = vpop.f32.mrb[0].mxu0
    %v508 = vadd.f32 0.0, %v507
    %v509 = vpop.f32.mrb[0].mxu0
    %v510 = vpop.f32.mrb[0].mxu0
    %v511 = vadd.f32 0.0, %v510
    %v512 = vpop.f32.mrb[0].mxu0
    %513 = vmatprep.mubr.bf16.mxu0 0
    %514 = vmatmul.mubr.bf16.gmra.mrb[0].mxu0 %v423
    %v515 = vpop.f32.mrb[0].mxu0
    %v516 = vadd.f32 0.0, %v515
    %v517 = vpop.f32.mrb[0].mxu0
    %v518 = vpop.f32.mrb[0].mxu0
    %v519 = vadd.f32 0.0, %v518
    %v520 = vpop.f32.mrb[0].mxu0
    %521 = vmatprep.mubr.bf16.mxu0 0
    %522 = vmatmul.mubr.bf16.gmra.mrb[0].mxu0 %v424
    %v523 = vpop.f32.mrb[0].mxu0
    %v524 = vadd.f32 0.0, %v523
    %v525 = vpop.f32.mrb[0].mxu0
    %v526 = vpop.f32.mrb[0].mxu0
    %v527 = vadd.f32 0.0, %v526
    %v528 = vpop.f32.mrb[0].mxu0
    %529 = vdwg.mxu0
    %v530 = vadd.f32 %v345, %v468
    %v531 = vadd.f32 %v346, %v471
    %v532 = vadd.f32 %v347, %v476
    %v533 = vadd.f32 %v348, %v479
    %v534 = vadd.f32 %v349, %v484
    %v535 = vadd.f32 %v350, %v487
    %v536 = vadd.f32 %v351, %v492
    %v537 = vadd.f32 %v352, %v495
    %v538 = vadd.f32 %v353, %v500
    %v539 = vadd.f32 %v354, %v503
    %v540 = vadd.f32 %v355, %v508
    %v541 = vadd.f32 %v356, %v511
    %v542 = vadd.f32 %v357, %v516
    %v543 = vadd.f32 %v358, %v519
    %v544 = vadd.f32 %v359, %v524
    %v545 = vadd.f32 %v360, %v527
    %546 = vst [vmem:[#allocation2] sm:$0xff] %v530
    %547 = vst [vmem:[#allocation2 + $0x8] sm:$0xff] %v531
    %548 = vst [vmem:[#allocation2 + $0x10] sm:$0xff] %v532
    %549 = vst [vmem:[#allocation2 + $0x18] sm:$0xff] %v533
    %550 = vst [vmem:[#allocation2 + $0x20] sm:$0xff] %v534
    %551 = vst [vmem:[#allocation2 + $0x28] sm:$0xff] %v535
    %552 = vst [vmem:[#allocation2 + $0x30] sm:$0xff] %v536
    %553 = vst [vmem:[#allocation2 + $0x38] sm:$0xff] %v537
    %554 = vst [vmem:[#allocation2 + $0x40] sm:$0xff] %v538
    %555 = vst [vmem:[#allocation2 + $0x48] sm:$0xff] %v539
    %556 = vst [vmem:[#allocation2 + $0x50] sm:$0xff] %v540
    %557 = vst [vmem:[#allocation2 + $0x58] sm:$0xff] %v541
    %558 = vst [vmem:[#allocation2 + $0x60] sm:$0xff] %v542
    %559 = vst [vmem:[#allocation2 + $0x68] sm:$0xff] %v543
    %560 = vst [vmem:[#allocation2 + $0x70] sm:$0xff] %v544
    %561 = vst [vmem:[#allocation2 + $0x78] sm:$0xff] %v545
    // Predicated region
    $region50: #{tpu_custom_call.1} parent=1 // pred_check
      %p562 = pneg %p51
    $region51: #{tpu_custom_call.1} parent=1 // pred_check_branch
      %564 = sbr.rel (%p562) target = $region53
    $region52: #{tpu_custom_call.1} parent=1 // pred_region
      %v565 = vld [vmem:[%s2] sm:$0xff]
      %v566 = vld [vmem:[%s2 + $0x8] sm:$0xff]
      %v567 = vld [vmem:[%s2 + $0x10] sm:$0xff]
      %v568 = vld [vmem:[%s2 + $0x18] sm:$0xff]
      %v569 = vld [vmem:[%s2 + $0x20] sm:$0xff]
      %v570 = vld [vmem:[%s2 + $0x28] sm:$0xff]
      %v571 = vld [vmem:[%s2 + $0x30] sm:$0xff]
      %v572 = vld [vmem:[%s2 + $0x38] sm:$0xff]
      %v573 = vld [vmem:[%s2 + $0x40] sm:$0xff]
      %v574 = vld [vmem:[%s2 + $0x48] sm:$0xff]
      %v575 = vld [vmem:[%s2 + $0x50] sm:$0xff]
      %v576 = vld [vmem:[%s2 + $0x58] sm:$0xff]
      %v577 = vld [vmem:[%s2 + $0x60] sm:$0xff]
      %v578 = vld [vmem:[%s2 + $0x68] sm:$0xff]
      %v579 = vld [vmem:[%s2 + $0x70] sm:$0xff]
      %v580 = vld [vmem:[%s2 + $0x78] sm:$0xff]
      %v581 = vld [vmem:[%s3] sm:$0xff]
      %v582 = vld [vmem:[%s3 + $0x8] sm:$0xff]
      %v583 = vld [vmem:[%s4] sm:$0x1]
      %v585 = vlaneseq
      %v586 = vshrl.u32 %v585, 7
      %v587 = vsub.s32 0, %v586
      %v588 = vrot.slane %v583, %v587
      %v591 = vsel %vm96, %v565, 0
      %v594 = vsel %vm96, %v566, 0
      %v597 = vsel %vm96, %v567, 0
      %v600 = vsel %vm96, %v568, 0
      %v603 = vsel %vm96, %v569, 0
      %v606 = vsel %vm96, %v570, 0
      %v609 = vsel %vm96, %v571, 0
      %v612 = vsel %vm96, %v572, 0
      %v615 = vsel %vm96, %v573, 0
      %v618 = vsel %vm96, %v574, 0
      %v621 = vsel %vm96, %v575, 0
      %v624 = vsel %vm96, %v576, 0
      %v627 = vsel %vm96, %v577, 0
      %v630 = vsel %vm96, %v578, 0
      %v633 = vsel %vm96, %v579, 0
      %v636 = vsel %vm96, %v580, 0
      %638 = vmatprep.subr.mxu0 0.0
      %639 = vmatpush1.msra.mxu0 %v581
      %640 = vmatprep.subr.mxu0 0.0
      %641 = vmatpush1.msra.mxu0 %v582
      %642 = vmatprep.subr.mxu0 0.0
      %643 = vmatpush1.msra.mxu0 0.0
      %644 = vmatprep.subr.mxu0 0.0
      %645 = vmatpush1.msra.mxu0 0.0
      %646 = vmatprep.subr.mxu0 0.0
      %647 = vmatpush1.msra.mxu0 0.0
      %648 = vmatprep.subr.mxu0 0.0
      %649 = vmatpush1.msra.mxu0 0.0
      %650 = vmatprep.subr.mxu0 0.0
      %651 = vmatpush1.msra.mxu0 0.0
      %652 = vmatprep.subr.mxu0 0.0
      %653 = vmatpush1.msra.mxu0 0.0
      %654 = vmatprep.subr.mxu0 0.0
      %655 = vmatpush1.msra.mxu0 0.0
      %656 = vmatprep.subr.mxu0 0.0
      %657 = vmatpush1.msra.mxu0 0.0
      %658 = vmatprep.subr.mxu0 0.0
      %659 = vmatpush1.msra.mxu0 0.0
      %660 = vmatprep.subr.mxu0 0.0
      %661 = vmatpush1.msra.mxu0 0.0
      %662 = vmatprep.subr.mxu0 0.0
      %663 = vmatpush1.msra.mxu0 0.0
      %664 = vmatprep.subr.mxu0 0.0
      %665 = vmatpush1.msra.mxu0 0.0
      %666 = vmatprep.subr.mxu0 0.0
      %667 = vmatpush1.msra.mxu0 0.0
      %668 = vmatprep.subr.mxu0 0.0
      %669 = vmatpush1.msra.mxu0 0.0
      %670 = vmatprep.subr.mxu0 0.0
      %671 = vmatpush1.msra.mxu0 0.0
      %672 = vmatprep.subr.mxu0 0.0
      %673 = vmatpush1.msra.mxu0 0.0
      %674 = vmatprep.subr.mxu0 0.0
      %675 = vmatpush1.msra.mxu0 0.0
      %676 = vmatprep.subr.mxu0 0.0
      %677 = vmatpush1.msra.mxu0 0.0
      %678 = vmatprep.subr.mxu0 0.0
      %679 = vmatpush1.msra.mxu0 0.0
      %680 = vmatprep.subr.mxu0 0.0
      %681 = vmatpush1.msra.mxu0 0.0
      %682 = vmatprep.subr.mxu0 0.0
      %683 = vmatpush1.msra.mxu0 0.0
      %684 = vmatprep.subr.mxu0 0.0
      %685 = vmatpush1.msra.mxu0 0.0
      %686 = vmatprep.subr.mxu0 0.0
      %687 = vmatpush1.msra.mxu0 0.0
      %688 = vmatprep.subr.mxu0 0.0
      %689 = vmatpush1.msra.mxu0 0.0
      %690 = vmatprep.subr.mxu0 0.0
      %691 = vmatpush1.msra.mxu0 0.0
      %692 = vmatprep.subr.mxu0 0.0
      %693 = vmatpush1.msra.mxu0 0.0
      %694 = vmatprep.subr.mxu0 0.0
      %695 = vmatpush1.msra.mxu0 0.0
      %696 = vmatprep.subr.mxu0 0.0
      %697 = vmatpush1.msra.mxu0 0.0
      %698 = vmatprep.subr.mxu0 0.0
      %699 = vmatpush1.msra.mxu0 0.0
      %700 = vmatprep.subr.mxu0 0.0
      %701 = vmatpush1.msra.mxu0 0.0
      %702 = vmatprep.mubr.f32.mxu0 0.0
      %703 = vmatmul.mubr.f32.gmra.mrb[0].mxu0 %v591
      %v704 = vpop.f32.mrb[0].mxu0
      %v705 = vadd.f32 %v588, %v704
      %v706 = vpop.f32.mrb[0].mxu0
      %707 = vmatprep.mubr.f32.mxu0 0.0
      %708 = vmatmul.mubr.f32.gmra.mrb[0].mxu0 %v594
      %v709 = vpop.f32.mrb[0].mxu0
      %v710 = vadd.f32 %v588, %v709
      %v711 = vpop.f32.mrb[0].mxu0
      %712 = vmatprep.mubr.f32.mxu0 0.0
      %713 = vmatmul.mubr.f32.gmra.mrb[0].mxu0 %v597
      %v714 = vpop.f32.mrb[0].mxu0
      %v715 = vadd.f32 %v588, %v714
      %v716 = vpop.f32.mrb[0].mxu0
      %717 = vmatprep.mubr.f32.mxu0 0.0
      %718 = vmatmul.mubr.f32.gmra.mrb[0].mxu0 %v600
      %v719 = vpop.f32.mrb[0].mxu0
      %v720 = vadd.f32 %v588, %v719
      %v721 = vpop.f32.mrb[0].mxu0
      %722 = vmatprep.mubr.f32.mxu0 0.0
      %723 = vmatmul.mubr.f32.gmra.mrb[0].mxu0 %v603
      %v724 = vpop.f32.mrb[0].mxu0
      %v725 = vadd.f32 %v588, %v724
      %v726 = vpop.f32.mrb[0].mxu0
      %727 = vmatprep.mubr.f32.mxu0 0.0
      %728 = vmatmul.mubr.f32.gmra.mrb[0].mxu0 %v606
      %v729 = vpop.f32.mrb[0].mxu0
      %v730 = vadd.f32 %v588, %v729
      %v731 = vpop.f32.mrb[0].mxu0
      %732 = vmatprep.mubr.f32.mxu0 0.0
      %733 = vmatmul.mubr.f32.gmra.mrb[0].mxu0 %v609
      %v734 = vpop.f32.mrb[0].mxu0
      %v735 = vadd.f32 %v588, %v734
      %v736 = vpop.f32.mrb[0].mxu0
      %737 = vmatprep.mubr.f32.mxu0 0.0
      %738 = vmatmul.mubr.f32.gmra.mrb[0].mxu0 %v612
      %v739 = vpop.f32.mrb[0].mxu0
      %v740 = vadd.f32 %v588, %v739
      %v741 = vpop.f32.mrb[0].mxu0
      %742 = vmatprep.mubr.f32.mxu0 0.0
      %743 = vmatmul.mubr.f32.gmra.mrb[0].mxu0 %v615
      %v744 = vpop.f32.mrb[0].mxu0
      %v745 = vadd.f32 %v588, %v744
      %v746 = vpop.f32.mrb[0].mxu0
      %747 = vmatprep.mubr.f32.mxu0 0.0
      %748 = vmatmul.mubr.f32.gmra.mrb[0].mxu0 %v618
      %v749 = vpop.f32.mrb[0].mxu0
      %v750 = vadd.f32 %v588, %v749
      %v751 = vpop.f32.mrb[0].mxu0
      %752 = vmatprep.mubr.f32.mxu0 0.0
      %753 = vmatmul.mubr.f32.gmra.mrb[0].mxu0 %v621
      %v754 = vpop.f32.mrb[0].mxu0
      %v755 = vadd.f32 %v588, %v754
      %v756 = vpop.f32.mrb[0].mxu0
      %757 = vmatprep.mubr.f32.mxu0 0.0
      %758 = vmatmul.mubr.f32.gmra.mrb[0].mxu0 %v624
      %v759 = vpop.f32.mrb[0].mxu0
      %v760 = vadd.f32 %v588, %v759
      %v761 = vpop.f32.mrb[0].mxu0
      %762 = vmatprep.mubr.f32.mxu0 0.0
      %763 = vmatmul.mubr.f32.gmra.mrb[0].mxu0 %v627
      %v764 = vpop.f32.mrb[0].mxu0
      %v765 = vadd.f32 %v588, %v764
      %v766 = vpop.f32.mrb[0].mxu0
      %767 = vmatprep.mubr.f32.mxu0 0.0
      %768 = vmatmul.mubr.f32.gmra.mrb[0].mxu0 %v630
      %v769 = vpop.f32.mrb[0].mxu0
      %v770 = vadd.f32 %v588, %v769
      %v771 = vpop.f32.mrb[0].mxu0
      %772 = vmatprep.mubr.f32.mxu0 0.0
      %773 = vmatmul.mubr.f32.gmra.mrb[0].mxu0 %v633
      %v774 = vpop.f32.mrb[0].mxu0
      %v775 = vadd.f32 %v588, %v774
      %v776 = vpop.f32.mrb[0].mxu0
      %777 = vmatprep.mubr.f32.mxu0 0.0
      %778 = vmatmul.mubr.f32.gmra.mrb[0].mxu0 %v636
      %v779 = vpop.f32.mrb[0].mxu0
      %v780 = vadd.f32 %v588, %v779
      %v781 = vpop.f32.mrb[0].mxu0
      %782 = vdwg.mxu0
      %v783 = vld [vmem:[%s5] sm:$0x1]
      %vm784 = vcmp.gt.f32.partialorder %v705, 0.0
      %vm785 = vcmp.gt.f32.partialorder %v710, 0.0
      %vm786 = vcmp.gt.f32.partialorder %v715, 0.0
      %vm787 = vcmp.gt.f32.partialorder %v720, 0.0
      %vm788 = vcmp.gt.f32.partialorder %v725, 0.0
      %vm789 = vcmp.gt.f32.partialorder %v730, 0.0
      %vm790 = vcmp.gt.f32.partialorder %v735, 0.0
      %vm791 = vcmp.gt.f32.partialorder %v740, 0.0
      %vm792 = vcmp.gt.f32.partialorder %v745, 0.0
      %vm793 = vcmp.gt.f32.partialorder %v750, 0.0
      %vm794 = vcmp.gt.f32.partialorder %v755, 0.0
      %vm795 = vcmp.gt.f32.partialorder %v760, 0.0
      %vm796 = vcmp.gt.f32.partialorder %v765, 0.0
      %vm797 = vcmp.gt.f32.partialorder %v770, 0.0
      %vm798 = vcmp.gt.f32.partialorder %v775, 0.0
      %vm799 = vcmp.gt.f32.partialorder %v780, 0.0
      %v801 = vlaneseq
      %v802 = vshrl.u32 %v801, 7
      %v803 = vsub.s32 0, %v802
      %v804 = vrot.slane %v783, %v803
      %v806 = vmul.f32 %v804, %v705
      %v807 = vmul.f32 %v804, %v710
      %v808 = vmul.f32 %v804, %v715
      %v809 = vmul.f32 %v804, %v720
      %v810 = vmul.f32 %v804, %v725
      %v811 = vmul.f32 %v804, %v730
      %v812 = vmul.f32 %v804, %v735
      %v813 = vmul.f32 %v804, %v740
      %v814 = vmul.f32 %v804, %v745
      %v815 = vmul.f32 %v804, %v750
      %v816 = vmul.f32 %v804, %v755
      %v817 = vmul.f32 %v804, %v760
      %v818 = vmul.f32 %v804, %v765
      %v819 = vmul.f32 %v804, %v770
      %v820 = vmul.f32 %v804, %v775
      %v821 = vmul.f32 %v804, %v780
      %v822 = vsel %vm784, %v705, %v806
      %v823 = vsel %vm785, %v710, %v807
      %v824 = vsel %vm786, %v715, %v808
      %v825 = vsel %vm787, %v720, %v809
      %v826 = vsel %vm788, %v725, %v810
      %v827 = vsel %vm789, %v730, %v811
      %v828 = vsel %vm790, %v735, %v812
      %v829 = vsel %vm791, %v740, %v813
      %v830 = vsel %vm792, %v745, %v814
      %v831 = vsel %vm793, %v750, %v815
      %v832 = vsel %vm794, %v755, %v816
      %v833 = vsel %vm795, %v760, %v817
      %v834 = vsel %vm796, %v765, %v818
      %v835 = vsel %vm797, %v770, %v819
      %v836 = vsel %vm798, %v775, %v820
      %v837 = vsel %vm799, %v780, %v821
      %v838 = vld [vmem:[#allocation2] sm:$0xff]
      %v839 = vld [vmem:[#allocation2 + $0x8] sm:$0xff]
      %v840 = vld [vmem:[#allocation2 + $0x10] sm:$0xff]
      %v841 = vld [vmem:[#allocation2 + $0x18] sm:$0xff]
      %v842 = vld [vmem:[#allocation2 + $0x20] sm:$0xff]
      %v843 = vld [vmem:[#allocation2 + $0x28] sm:$0xff]
      %v844 = vld [vmem:[#allocation2 + $0x30] sm:$0xff]
      %v845 = vld [vmem:[#allocation2 + $0x38] sm:$0xff]
      %v846 = vld [vmem:[#allocation2 + $0x40] sm:$0xff]
      %v847 = vld [vmem:[#allocation2 + $0x48] sm:$0xff]
      %v848 = vld [vmem:[#allocation2 + $0x50] sm:$0xff]
      %v849 = vld [vmem:[#allocation2 + $0x58] sm:$0xff]
      %v850 = vld [vmem:[#allocation2 + $0x60] sm:$0xff]
      %v851 = vld [vmem:[#allocation2 + $0x68] sm:$0xff]
      %v852 = vld [vmem:[#allocation2 + $0x70] sm:$0xff]
      %v853 = vld [vmem:[#allocation2 + $0x78] sm:$0xff]
      %v854 = vld [vmem:[%s6] sm:$0xff]
      %v855 = vld [vmem:[%s6 + $0x8] sm:$0xff]
      %v856 = vld [vmem:[%s6 + $0x10] sm:$0xff]
      %v857 = vld [vmem:[%s6 + $0x18] sm:$0xff]
      %v858 = vld [vmem:[%s6 + $0x20] sm:$0xff]
      %v859 = vld [vmem:[%s6 + $0x28] sm:$0xff]
      %v860 = vld [vmem:[%s6 + $0x30] sm:$0xff]
      %v861 = vld [vmem:[%s6 + $0x38] sm:$0xff]
      %v862 = vld [vmem:[%s6 + $0x40] sm:$0xff]
      %v863 = vld [vmem:[%s6 + $0x48] sm:$0xff]
      %v864 = vld [vmem:[%s6 + $0x50] sm:$0xff]
      %v865 = vld [vmem:[%s6 + $0x58] sm:$0xff]
      %v866 = vld [vmem:[%s6 + $0x60] sm:$0xff]
      %v867 = vld [vmem:[%s6 + $0x68] sm:$0xff]
      %v868 = vld [vmem:[%s6 + $0x70] sm:$0xff]
      %v869 = vld [vmem:[%s6 + $0x78] sm:$0xff]
      %v870 = vld [vmem:[%s7] sm:$0x1]
      %v872 = vlaneseq
      %v873 = vshrl.u32 %v872, 7
      %v874 = vsub.s32 0, %v873
      %v875 = vrot.slane %v870, %v874
      %877 = vmatprep.subr.mxu0 0.0
      %878 = vmatpush1.msra.mxu0 %v854
      %879 = vmatprep.subr.mxu0 0.0
      %880 = vmatpush1.msra.mxu0 %v855
      %881 = vmatprep.subr.mxu0 0.0
      %882 = vmatpush1.msra.mxu0 %v856
      %883 = vmatprep.subr.mxu0 0.0
      %884 = vmatpush1.msra.mxu0 %v857
      %885 = vmatprep.subr.mxu0 0.0
      %886 = vmatpush1.msra.mxu0 %v858
      %887 = vmatprep.subr.mxu0 0.0
      %888 = vmatpush1.msra.mxu0 %v859
      %889 = vmatprep.subr.mxu0 0.0
      %890 = vmatpush1.msra.mxu0 %v860
      %891 = vmatprep.subr.mxu0 0.0
      %892 = vmatpush1.msra.mxu0 %v861
      %893 = vmatprep.subr.mxu0 0.0
      %894 = vmatpush1.msra.mxu0 %v862
      %895 = vmatprep.subr.mxu0 0.0
      %896 = vmatpush1.msra.mxu0 %v863
      %897 = vmatprep.subr.mxu0 0.0
      %898 = vmatpush1.msra.mxu0 %v864
      %899 = vmatprep.subr.mxu0 0.0
      %900 = vmatpush1.msra.mxu0 %v865
      %901 = vmatprep.subr.mxu0 0.0
      %902 = vmatpush1.msra.mxu0 %v866
      %903 = vmatprep.subr.mxu0 0.0
      %904 = vmatpush1.msra.mxu0 %v867
      %905 = vmatprep.subr.mxu0 0.0
      %906 = vmatpush1.msra.mxu0 %v868
      %907 = vmatprep.subr.mxu0 0.0
      %908 = vmatpush1.msra.mxu0 %v869
      %909 = vmatprep.subr.mxu0 0.0
      %910 = vmatpush1.msra.mxu0 0.0
      %911 = vmatprep.subr.mxu0 0.0
      %912 = vmatpush1.msra.mxu0 0.0
      %913 = vmatprep.subr.mxu0 0.0
      %914 = vmatpush1.msra.mxu0 0.0
      %915 = vmatprep.subr.mxu0 0.0
      %916 = vmatpush1.msra.mxu0 0.0
      %917 = vmatprep.subr.mxu0 0.0
      %918 = vmatpush1.msra.mxu0 0.0
      %919 = vmatprep.subr.mxu0 0.0
      %920 = vmatpush1.msra.mxu0 0.0
      %921 = vmatprep.subr.mxu0 0.0
      %922 = vmatpush1.msra.mxu0 0.0
      %923 = vmatprep.subr.mxu0 0.0
      %924 = vmatpush1.msra.mxu0 0.0
      %925 = vmatprep.subr.mxu0 0.0
      %926 = vmatpush1.msra.mxu0 0.0
      %927 = vmatprep.subr.mxu0 0.0
      %928 = vmatpush1.msra.mxu0 0.0
      %929 = vmatprep.subr.mxu0 0.0
      %930 = vmatpush1.msra.mxu0 0.0
      %931 = vmatprep.subr.mxu0 0.0
      %932 = vmatpush1.msra.mxu0 0.0
      %933 = vmatprep.subr.mxu0 0.0
      %934 = vmatpush1.msra.mxu0 0.0
      %935 = vmatprep.subr.mxu0 0.0
      %936 = vmatpush1.msra.mxu0 0.0
      %937 = vmatprep.subr.mxu0 0.0
      %938 = vmatpush1.msra.mxu0 0.0
      %939 = vmatprep.subr.mxu0 0.0
      %940 = vmatpush1.msra.mxu0 0.0
      %941 = vmatprep.mubr.f32.mxu0 0.0
      %942 = vmatmul.mubr.f32.gmra.mrb[0].mxu0 %v838
      %v943 = vpop.f32.mrb[0].mxu0
      %v944 = vadd.f32 %v875, %v943
      %v945 = vpop.f32.mrb[0].mxu0
      %946 = vmatprep.mubr.f32.mxu0 0.0
      %947 = vmatmul.mubr.f32.gmra.mrb[0].mxu0 %v839
      %v948 = vpop.f32.mrb[0].mxu0
      %v949 = vadd.f32 %v875, %v948
      %v950 = vpop.f32.mrb[0].mxu0
      %951 = vmatprep.mubr.f32.mxu0 0.0
      %952 = vmatmul.mubr.f32.gmra.mrb[0].mxu0 %v840
      %v953 = vpop.f32.mrb[0].mxu0
      %v954 = vadd.f32 %v875, %v953
      %v955 = vpop.f32.mrb[0].mxu0
      %956 = vmatprep.mubr.f32.mxu0 0.0
      %957 = vmatmul.mubr.f32.gmra.mrb[0].mxu0 %v841
      %v958 = vpop.f32.mrb[0].mxu0
      %v959 = vadd.f32 %v875, %v958
      %v960 = vpop.f32.mrb[0].mxu0
      %961 = vmatprep.mubr.f32.mxu0 0.0
      %962 = vmatmul.mubr.f32.gmra.mrb[0].mxu0 %v842
      %v963 = vpop.f32.mrb[0].mxu0
      %v964 = vadd.f32 %v875, %v963
      %v965 = vpop.f32.mrb[0].mxu0
      %966 = vmatprep.mubr.f32.mxu0 0.0
      %967 = vmatmul.mubr.f32.gmra.mrb[0].mxu0 %v843
      %v968 = vpop.f32.mrb[0].mxu0
      %v969 = vadd.f32 %v875, %v968
      %v970 = vpop.f32.mrb[0].mxu0
      %971 = vmatprep.mubr.f32.mxu0 0.0
      %972 = vmatmul.mubr.f32.gmra.mrb[0].mxu0 %v844
      %v973 = vpop.f32.mrb[0].mxu0
      %v974 = vadd.f32 %v875, %v973
      %v975 = vpop.f32.mrb[0].mxu0
      %976 = vmatprep.mubr.f32.mxu0 0.0
      %977 = vmatmul.mubr.f32.gmra.mrb[0].mxu0 %v845
      %v978 = vpop.f32.mrb[0].mxu0
      %v979 = vadd.f32 %v875, %v978
      %v980 = vpop.f32.mrb[0].mxu0
      %981 = vmatprep.mubr.f32.mxu0 0.0
      %982 = vmatmul.mubr.f32.gmra.mrb[0].mxu0 %v846
      %v983 = vpop.f32.mrb[0].mxu0
      %v984 = vadd.f32 %v875, %v983
      %v985 = vpop.f32.mrb[0].mxu0
      %986 = vmatprep.mubr.f32.mxu0 0.0
      %987 = vmatmul.mubr.f32.gmra.mrb[0].mxu0 %v847
      %v988 = vpop.f32.mrb[0].mxu0
      %v989 = vadd.f32 %v875, %v988
      %v990 = vpop.f32.mrb[0].mxu0
      %991 = vmatprep.mubr.f32.mxu0 0.0
      %992 = vmatmul.mubr.f32.gmra.mrb[0].mxu0 %v848
      %v993 = vpop.f32.mrb[0].mxu0
      %v994 = vadd.f32 %v875, %v993
      %v995 = vpop.f32.mrb[0].mxu0
      %996 = vmatprep.mubr.f32.mxu0 0.0
      %997 = vmatmul.mubr.f32.gmra.mrb[0].mxu0 %v849
      %v998 = vpop.f32.mrb[0].mxu0
      %v999 = vadd.f32 %v875, %v998
      %v1000 = vpop.f32.mrb[0].mxu0
      %1001 = vmatprep.mubr.f32.mxu0 0.0
      %1002 = vmatmul.mubr.f32.gmra.mrb[0].mxu0 %v850
      %v1003 = vpop.f32.mrb[0].mxu0
      %v1004 = vadd.f32 %v875, %v1003
      %v1005 = vpop.f32.mrb[0].mxu0
      %1006 = vmatprep.mubr.f32.mxu0 0.0
      %1007 = vmatmul.mubr.f32.gmra.mrb[0].mxu0 %v851
      %v1008 = vpop.f32.mrb[0].mxu0
      %v1009 = vadd.f32 %v875, %v1008
      %v1010 = vpop.f32.mrb[0].mxu0
      %1011 = vmatprep.mubr.f32.mxu0 0.0
      %1012 = vmatmul.mubr.f32.gmra.mrb[0].mxu0 %v852
      %v1013 = vpop.f32.mrb[0].mxu0
      %v1014 = vadd.f32 %v875, %v1013
      %v1015 = vpop.f32.mrb[0].mxu0
      %1016 = vmatprep.mubr.f32.mxu0 0.0
      %1017 = vmatmul.mubr.f32.gmra.mrb[0].mxu0 %v853
      %v1018 = vpop.f32.mrb[0].mxu0
      %v1019 = vadd.f32 %v875, %v1018
      %v1020 = vpop.f32.mrb[0].mxu0
      %1021 = vdwg.mxu0
      %v1022 = vld [vmem:[%s8] sm:$0xff]
      %v1023 = vld [vmem:[%s8 + $0x8] sm:$0xff]
      %v1024 = vld [vmem:[%s8 + $0x10] sm:$0xff]
      %v1025 = vld [vmem:[%s8 + $0x18] sm:$0xff]
      %v1026 = vld [vmem:[%s8 + $0x20] sm:$0xff]
      %v1027 = vld [vmem:[%s8 + $0x28] sm:$0xff]
      %v1028 = vld [vmem:[%s8 + $0x30] sm:$0xff]
      %v1029 = vld [vmem:[%s8 + $0x38] sm:$0xff]
      %v1030 = vld [vmem:[%s8 + $0x40] sm:$0xff]
      %v1031 = vld [vmem:[%s8 + $0x48] sm:$0xff]
      %v1032 = vld [vmem:[%s8 + $0x50] sm:$0xff]
      %v1033 = vld [vmem:[%s8 + $0x58] sm:$0xff]
      %v1034 = vld [vmem:[%s8 + $0x60] sm:$0xff]
      %v1035 = vld [vmem:[%s8 + $0x68] sm:$0xff]
      %v1036 = vld [vmem:[%s8 + $0x70] sm:$0xff]
      %v1037 = vld [vmem:[%s8 + $0x78] sm:$0xff]
      %1038 = vmatprep.subr.mxu0 0.0
      %1039 = vmatpush1.msra.mxu0 %v1022
      %1040 = vmatprep.subr.mxu0 0.0
      %1041 = vmatpush1.msra.mxu0 %v1023
      %1042 = vmatprep.subr.mxu0 0.0
      %1043 = vmatpush1.msra.mxu0 %v1024
      %1044 = vmatprep.subr.mxu0 0.0
      %1045 = vmatpush1.msra.mxu0 %v1025
      %1046 = vmatprep.subr.mxu0 0.0
      %1047 = vmatpush1.msra.mxu0 %v1026
      %1048 = vmatprep.subr.mxu0 0.0
      %1049 = vmatpush1.msra.mxu0 %v1027
      %1050 = vmatprep.subr.mxu0 0.0
      %1051 = vmatpush1.msra.mxu0 %v1028
      %1052 = vmatprep.subr.mxu0 0.0
      %1053 = vmatpush1.msra.mxu0 %v1029
      %1054 = vmatprep.subr.mxu0 0.0
      %1055 = vmatpush1.msra.mxu0 %v1030
      %1056 = vmatprep.subr.mxu0 0.0
      %1057 = vmatpush1.msra.mxu0 %v1031
      %1058 = vmatprep.subr.mxu0 0.0
      %1059 = vmatpush1.msra.mxu0 %v1032
      %1060 = vmatprep.subr.mxu0 0.0
      %1061 = vmatpush1.msra.mxu0 %v1033
      %1062 = vmatprep.subr.mxu0 0.0
      %1063 = vmatpush1.msra.mxu0 %v1034
      %1064 = vmatprep.subr.mxu0 0.0
      %1065 = vmatpush1.msra.mxu0 %v1035
      %1066 = vmatprep.subr.mxu0 0.0
      %1067 = vmatpush1.msra.mxu0 %v1036
      %1068 = vmatprep.subr.mxu0 0.0
      %1069 = vmatpush1.msra.mxu0 %v1037
      %1070 = vmatprep.subr.mxu0 0.0
      %1071 = vmatpush1.msra.mxu0 0.0
      %1072 = vmatprep.subr.mxu0 0.0
      %1073 = vmatpush1.msra.mxu0 0.0
      %1074 = vmatprep.subr.mxu0 0.0
      %1075 = vmatpush1.msra.mxu0 0.0
      %1076 = vmatprep.subr.mxu0 0.0
      %1077 = vmatpush1.msra.mxu0 0.0
      %1078 = vmatprep.subr.mxu0 0.0
      %1079 = vmatpush1.msra.mxu0 0.0
      %1080 = vmatprep.subr.mxu0 0.0
      %1081 = vmatpush1.msra.mxu0 0.0
      %1082 = vmatprep.subr.mxu0 0.0
      %1083 = vmatpush1.msra.mxu0 0.0
      %1084 = vmatprep.subr.mxu0 0.0
      %1085 = vmatpush1.msra.mxu0 0.0
      %1086 = vmatprep.subr.mxu0 0.0
      %1087 = vmatpush1.msra.mxu0 0.0
      %1088 = vmatprep.subr.mxu0 0.0
      %1089 = vmatpush1.msra.mxu0 0.0
      %1090 = vmatprep.subr.mxu0 0.0
      %1091 = vmatpush1.msra.mxu0 0.0
      %1092 = vmatprep.subr.mxu0 0.0
      %1093 = vmatpush1.msra.mxu0 0.0
      %1094 = vmatprep.subr.mxu0 0.0
      %1095 = vmatpush1.msra.mxu0 0.0
      %1096 = vmatprep.subr.mxu0 0.0
      %1097 = vmatpush1.msra.mxu0 0.0
      %1098 = vmatprep.subr.mxu0 0.0
      %1099 = vmatpush1.msra.mxu0 0.0
      %1100 = vmatprep.subr.mxu0 0.0
      %1101 = vmatpush1.msra.mxu0 0.0
      %1102 = vmatprep.mubr.f32.mxu0 0.0
      %1103 = vmatmul.mubr.f32.gmra.mrb[0].mxu0 %v822
      %v1104 = vpop.f32.mrb[0].mxu0
      %v1105 = vadd.f32 0.0, %v1104
      %v1106 = vpop.f32.mrb[0].mxu0
      %1107 = vmatprep.mubr.f32.mxu0 0.0
      %1108 = vmatmul.mubr.f32.gmra.mrb[0].mxu0 %v823
      %v1109 = vpop.f32.mrb[0].mxu0
      %v1110 = vadd.f32 0.0, %v1109
      %v1111 = vpop.f32.mrb[0].mxu0
      %1112 = vmatprep.mubr.f32.mxu0 0.0
      %1113 = vmatmul.mubr.f32.gmra.mrb[0].mxu0 %v824
      %v1114 = vpop.f32.mrb[0].mxu0
      %v1115 = vadd.f32 0.0, %v1114
      %v1116 = vpop.f32.mrb[0].mxu0
      %1117 = vmatprep.mubr.f32.mxu0 0.0
      %1118 = vmatmul.mubr.f32.gmra.mrb[0].mxu0 %v825
      %v1119 = vpop.f32.mrb[0].mxu0
      %v1120 = vadd.f32 0.0, %v1119
      %v1121 = vpop.f32.mrb[0].mxu0
      %1122 = vmatprep.mubr.f32.mxu0 0.0
      %1123 = vmatmul.mubr.f32.gmra.mrb[0].mxu0 %v826
      %v1124 = vpop.f32.mrb[0].mxu0
      %v1125 = vadd.f32 0.0, %v1124
      %v1126 = vpop.f32.mrb[0].mxu0
      %1127 = vmatprep.mubr.f32.mxu0 0.0
      %1128 = vmatmul.mubr.f32.gmra.mrb[0].mxu0 %v827
      %v1129 = vpop.f32.mrb[0].mxu0
      %v1130 = vadd.f32 0.0, %v1129
      %v1131 = vpop.f32.mrb[0].mxu0
      %1132 = vmatprep.mubr.f32.mxu0 0.0
      %1133 = vmatmul.mubr.f32.gmra.mrb[0].mxu0 %v828
      %v1134 = vpop.f32.mrb[0].mxu0
      %v1135 = vadd.f32 0.0, %v1134
      %v1136 = vpop.f32.mrb[0].mxu0
      %1137 = vmatprep.mubr.f32.mxu0 0.0
      %1138 = vmatmul.mubr.f32.gmra.mrb[0].mxu0 %v829
      %v1139 = vpop.f32.mrb[0].mxu0
      %v1140 = vadd.f32 0.0, %v1139
      %v1141 = vpop.f32.mrb[0].mxu0
      %1142 = vmatprep.mubr.f32.mxu0 0.0
      %1143 = vmatmul.mubr.f32.gmra.mrb[0].mxu0 %v830
      %v1144 = vpop.f32.mrb[0].mxu0
      %v1145 = vadd.f32 0.0, %v1144
      %v1146 = vpop.f32.mrb[0].mxu0
      %1147 = vmatprep.mubr.f32.mxu0 0.0
      %1148 = vmatmul.mubr.f32.gmra.mrb[0].mxu0 %v831
      %v1149 = vpop.f32.mrb[0].mxu0
      %v1150 = vadd.f32 0.0, %v1149
      %v1151 = vpop.f32.mrb[0].mxu0
      %1152 = vmatprep.mubr.f32.mxu0 0.0
      %1153 = vmatmul.mubr.f32.gmra.mrb[0].mxu0 %v832
      %v1154 = vpop.f32.mrb[0].mxu0
      %v1155 = vadd.f32 0.0, %v1154
      %v1156 = vpop.f32.mrb[0].mxu0
      %1157 = vmatprep.mubr.f32.mxu0 0.0
      %1158 = vmatmul.mubr.f32.gmra.mrb[0].mxu0 %v833
      %v1159 = vpop.f32.mrb[0].mxu0
      %v1160 = vadd.f32 0.0, %v1159
      %v1161 = vpop.f32.mrb[0].mxu0
      %1162 = vmatprep.mubr.f32.mxu0 0.0
      %1163 = vmatmul.mubr.f32.gmra.mrb[0].mxu0 %v834
      %v1164 = vpop.f32.mrb[0].mxu0
      %v1165 = vadd.f32 0.0, %v1164
      %v1166 = vpop.f32.mrb[0].mxu0
      %1167 = vmatprep.mubr.f32.mxu0 0.0
      %1168 = vmatmul.mubr.f32.gmra.mrb[0].mxu0 %v835
      %v1169 = vpop.f32.mrb[0].mxu0
      %v1170 = vadd.f32 0.0, %v1169
      %v1171 = vpop.f32.mrb[0].mxu0
      %1172 = vmatprep.mubr.f32.mxu0 0.0
      %1173 = vmatmul.mubr.f32.gmra.mrb[0].mxu0 %v836
      %v1174 = vpop.f32.mrb[0].mxu0
      %v1175 = vadd.f32 0.0, %v1174
      %v1176 = vpop.f32.mrb[0].mxu0
      %1177 = vmatprep.mubr.f32.mxu0 0.0
      %1178 = vmatmul.mubr.f32.gmra.mrb[0].mxu0 %v837
      %v1179 = vpop.f32.mrb[0].mxu0
      %v1180 = vadd.f32 0.0, %v1179
      %v1181 = vpop.f32.mrb[0].mxu0
      %1182 = vdwg.mxu0
      %v1183 = vadd.f32 %v944, %v1105
      %v1184 = vadd.f32 %v949, %v1110
      %v1185 = vadd.f32 %v954, %v1115
      %v1186 = vadd.f32 %v959, %v1120
      %v1187 = vadd.f32 %v964, %v1125
      %v1188 = vadd.f32 %v969, %v1130
      %v1189 = vadd.f32 %v974, %v1135
      %v1190 = vadd.f32 %v979, %v1140
      %v1191 = vadd.f32 %v984, %v1145
      %v1192 = vadd.f32 %v989, %v1150
      %v1193 = vadd.f32 %v994, %v1155
      %v1194 = vadd.f32 %v999, %v1160
      %v1195 = vadd.f32 %v1004, %v1165
      %v1196 = vadd.f32 %v1009, %v1170
      %v1197 = vadd.f32 %v1014, %v1175
      %v1198 = vadd.f32 %v1019, %v1180
      %v1199 = vld [vmem:[%s9] sm:$0x1]
      %vm1200 = vcmp.gt.f32.partialorder %v1183, 0.0
      %vm1201 = vcmp.gt.f32.partialorder %v1184, 0.0
      %vm1202 = vcmp.gt.f32.partialorder %v1185, 0.0
      %vm1203 = vcmp.gt.f32.partialorder %v1186, 0.0
      %vm1204 = vcmp.gt.f32.partialorder %v1187, 0.0
      %vm1205 = vcmp.gt.f32.partialorder %v1188, 0.0
      %vm1206 = vcmp.gt.f32.partialorder %v1189, 0.0
      %vm1207 = vcmp.gt.f32.partialorder %v1190, 0.0
      %vm1208 = vcmp.gt.f32.partialorder %v1191, 0.0
      %vm1209 = vcmp.gt.f32.partialorder %v1192, 0.0
      %vm1210 = vcmp.gt.f32.partialorder %v1193, 0.0
      %vm1211 = vcmp.gt.f32.partialorder %v1194, 0.0
      %vm1212 = vcmp.gt.f32.partialorder %v1195, 0.0
      %vm1213 = vcmp.gt.f32.partialorder %v1196, 0.0
      %vm1214 = vcmp.gt.f32.partialorder %v1197, 0.0
      %vm1215 = vcmp.gt.f32.partialorder %v1198, 0.0
      %v1217 = vlaneseq
      %v1218 = vshrl.u32 %v1217, 7
      %v1219 = vsub.s32 0, %v1218
      %v1220 = vrot.slane %v1199, %v1219
      %v1222 = vmul.f32 %v1220, %v1183
      %v1223 = vmul.f32 %v1220, %v1184
      %v1224 = vmul.f32 %v1220, %v1185
      %v1225 = vmul.f32 %v1220, %v1186
      %v1226 = vmul.f32 %v1220, %v1187
      %v1227 = vmul.f32 %v1220, %v1188
      %v1228 = vmul.f32 %v1220, %v1189
      %v1229 = vmul.f32 %v1220, %v1190
      %v1230 = vmul.f32 %v1220, %v1191
      %v1231 = vmul.f32 %v1220, %v1192
      %v1232 = vmul.f32 %v1220, %v1193
      %v1233 = vmul.f32 %v1220, %v1194
      %v1234 = vmul.f32 %v1220, %v1195
      %v1235 = vmul.f32 %v1220, %v1196
      %v1236 = vmul.f32 %v1220, %v1197
      %v1237 = vmul.f32 %v1220, %v1198
      %v1238 = vsel %vm1200, %v1183, %v1222
      %v1239 = vsel %vm1201, %v1184, %v1223
      %v1240 = vsel %vm1202, %v1185, %v1224
      %v1241 = vsel %vm1203, %v1186, %v1225
      %v1242 = vsel %vm1204, %v1187, %v1226
      %v1243 = vsel %vm1205, %v1188, %v1227
      %v1244 = vsel %vm1206, %v1189, %v1228
      %v1245 = vsel %vm1207, %v1190, %v1229
      %v1246 = vsel %vm1208, %v1191, %v1230
      %v1247 = vsel %vm1209, %v1192, %v1231
      %v1248 = vsel %vm1210, %v1193, %v1232
      %v1249 = vsel %vm1211, %v1194, %v1233
      %v1250 = vsel %vm1212, %v1195, %v1234
      %v1251 = vsel %vm1213, %v1196, %v1235
      %v1252 = vsel %vm1214, %v1197, %v1236
      %v1253 = vsel %vm1215, %v1198, %v1237
      %v1254 = vpack.c.bf16 %v1239, %v1238
      %v1255 = vpack.c.bf16 %v1241, %v1240
      %v1256 = vpack.c.bf16 %v1243, %v1242
      %v1257 = vpack.c.bf16 %v1245, %v1244
      %v1258 = vpack.c.bf16 %v1247, %v1246
      %v1259 = vpack.c.bf16 %v1249, %v1248
      %v1260 = vpack.c.bf16 %v1251, %v1250
      %v1261 = vpack.c.bf16 %v1253, %v1252
      %v1270 = vunpack.c.l.b16 %v1254
      %v1271 = vunpack.c.h.b16 %v1254
      %v1272 = vunpack.c.l.b16 %v1255
      %v1273 = vunpack.c.h.b16 %v1255
      %v1274 = vunpack.c.l.b16 %v1256
      %v1275 = vunpack.c.h.b16 %v1256
      %v1276 = vunpack.c.l.b16 %v1257
      %v1277 = vunpack.c.h.b16 %v1257
      %v1278 = vunpack.c.l.b16 %v1258
      %v1279 = vunpack.c.h.b16 %v1258
      %v1280 = vunpack.c.l.b16 %v1259
      %v1281 = vunpack.c.h.b16 %v1259
      %v1282 = vunpack.c.l.b16 %v1260
      %v1283 = vunpack.c.h.b16 %v1260
      %v1284 = vunpack.c.l.b16 %v1261
      %v1285 = vunpack.c.h.b16 %v1261
      %v1286 = vpack.c.b16 %v1270, %v1270
      %v1287 = vpack.c.b16 %v1271, %v1271
      %v1288 = vpack.c.b16 %v1272, %v1272
      %v1289 = vpack.c.b16 %v1273, %v1273
      %v1290 = vpack.c.b16 %v1274, %v1274
      %v1291 = vpack.c.b16 %v1275, %v1275
      %v1292 = vpack.c.b16 %v1276, %v1276
      %v1293 = vpack.c.b16 %v1277, %v1277
      %v1294 = vpack.c.b16 %v1278, %v1278
      %v1295 = vpack.c.b16 %v1279, %v1279
      %v1296 = vpack.c.b16 %v1280, %v1280
      %v1297 = vpack.c.b16 %v1281, %v1281
      %v1298 = vpack.c.b16 %v1282, %v1282
      %v1299 = vpack.c.b16 %v1283, %v1283
      %v1300 = vpack.c.b16 %v1284, %v1284
      %v1301 = vpack.c.b16 %v1285, %v1285
      %1318 = vst [vmem:[#allocation6] sm:$0xf] %v1286
      %1319 = vst [vmem:[#allocation6 + $0x4] sm:$0xf] %v1287
      %1320 = vst [vmem:[#allocation6 + $0x8] sm:$0xf] %v1288
      %1321 = vst [vmem:[#allocation6 + $0xc] sm:$0xf] %v1289
      %1322 = vst [vmem:[#allocation6 + $0x10] sm:$0xf] %v1290
      %1323 = vst [vmem:[#allocation6 + $0x14] sm:$0xf] %v1291
      %1324 = vst [vmem:[#allocation6 + $0x18] sm:$0xf] %v1292
      %1325 = vst [vmem:[#allocation6 + $0x1c] sm:$0xf] %v1293
      %1326 = vst [vmem:[#allocation6 + $0x20] sm:$0xf] %v1294
      %1327 = vst [vmem:[#allocation6 + $0x24] sm:$0xf] %v1295
      %1328 = vst [vmem:[#allocation6 + $0x28] sm:$0xf] %v1296
      %1329 = vst [vmem:[#allocation6 + $0x2c] sm:$0xf] %v1297
      %1330 = vst [vmem:[#allocation6 + $0x30] sm:$0xf] %v1298
      %1331 = vst [vmem:[#allocation6 + $0x34] sm:$0xf] %v1299
      %1332 = vst [vmem:[#allocation6 + $0x38] sm:$0xf] %v1300
      %1333 = vst [vmem:[#allocation6 + $0x3c] sm:$0xf] %v1301
    $region53: #{tpu_custom_call.1} parent=1 // pred_fallthru
      _
    // Predicated region
    $region54: #{tpu_custom_call.1} parent=1 // pred_check
      _
    $region55: #{tpu_custom_call.1} parent=1 // pred_check_branch
      %1335 = sbr.rel (0) target = $region57
    $region56: #{tpu_custom_call.1} parent=1 // pred_region
      %s1337 = ssub.s32 1024, 1024
      %1338 = vsyncadd [#allocation5], %s1337
      %s1339 = sshll.u32 [#allocation6], 4
      %s1340 = int_to_ptr.vmem [resolvable:$true] %s1339
      %1345 = dma.vmem_to_hbm [thread:$0]  %s1340, 1024, %s10, [#allocation5], 64, 64, 4
    $region57: #{tpu_custom_call.1} parent=1 // pred_fallthru
      _
    // Predicated region
    $region58: #{tpu_custom_call.1} parent=1 // pred_check
      _
    $region59: #{tpu_custom_call.1} parent=1 // pred_check_branch
      %1347 = sbr.rel (0) target = $region61
    $region60: #{tpu_custom_call.1} parent=1 // pred_region
      %1348 = dma.done [#allocation5], 1024
    $region61: #{tpu_custom_call.1} parent=1 // pred_fallthru
      _
    %1349 = vsyncpa [#allocation4], 1
    %1350 = vsyncpa [#allocation5], 1

</llo_original>
